<compile_context>
chip_gen: v5e
topology: v5e:2x2
jax: 0.10.0
libtpu: 0.0.40
codegen_flags: <defaults>
</compile_context>

<pallas_src>
import functools

import jax
import jax.numpy as jnp
from jax.experimental import pallas as pl
from jax.experimental.pallas import tpu as pltpu


def _round_up(x, m):
    return ((x + m - 1) // m) * m


def _cnn_encoder_kernel(x_ref, *refs, filters, highway_layers):
    n_f = len(filters)
    conv_w_refs = refs[:n_f]
    conv_b_refs = refs[n_f:2 * n_f]
    (wh_new_ref, wh_gate_ref, bh_new_ref, bh_gate_ref,
     wo_ref, bo_ref, out_ref) = refs[2 * n_f:]

    x = x_ref[...]                                  # (TB, T, D_in) f32
    TB, T, D_in = x.shape

    # --- Conv1d bank + max-over-time + ReLU, fused per filter ---
    pooled = []
    for f, (width, out_c) in enumerate(filters):
        w = conv_w_refs[f][...]                     # (width, D_in, out_c)
        b = conv_b_refs[f][...]                     # (1, out_c)
        t_out = T - width + 1
        acc = None
        for k in range(width):
            xk = x[:, k:k + t_out, :]               # (TB, t_out, D_in)
            wk = jnp.broadcast_to(w[k][None, :, :], (TB, D_in, out_c))
            term = jnp.einsum('btd,bdo->bto', xk, wk,
                              preferred_element_type=jnp.float32)
            acc = term if acc is None else acc + term
        # bias is constant over time: max_t(y + b) == max_t(y) + b
        y = jnp.max(acc, axis=1) + b                # (TB, out_c)
        y = jnp.maximum(y, 0.0)                     # ReLU (after max, as in torch)
        pooled.append(y)
    h = jnp.concatenate(pooled, axis=-1)            # (TB, F)

    # --- Highway layer(s) ---
    wh_new = wh_new_ref[...]                        # (L, F, F)
    wh_gate = wh_gate_ref[...]                      # (L, F, F)
    bh_new = bh_new_ref[...]                        # (L, F)
    bh_gate = bh_gate_ref[...]                      # (L, F)
    for l in range(highway_layers):
        new = jnp.dot(h, wh_new[l],
                      preferred_element_type=jnp.float32) + bh_new[l][None, :]
        gate = jnp.dot(h, wh_gate[l],
                       preferred_element_type=jnp.float32) + bh_gate[l][None, :]
        new = jnp.maximum(new, 0.0)
        g = 1.0 / (1.0 + jnp.exp(-gate))            # sigmoid
        h = g * h + (1.0 - g) * new

    # --- Output projection ---
    out = jnp.dot(h, wo_ref[...],
                  preferred_element_type=jnp.float32) + bo_ref[...]
    out_ref[...] = out.astype(out_ref.dtype)


def cnn_encoder_pallas(x, params, *, filters, highway_layers, block_b=128):
    """x: [B, T, D_in].  Returns [B, output_dim]."""
    B, T, D_in = x.shape
    wo = params['wo']
    F_dim, out_dim = wo.shape
    L = highway_layers

    # Batch tile: multiple of 8 sublanes; pad B up so the grid divides evenly.
    TB = min(block_b, _round_up(B, 8))
    B_pad = _round_up(B, TB)
    x_pad = jnp.pad(x.astype(jnp.float32), ((0, B_pad - B), (0, 0), (0, 0)))

    conv_ws = [w.astype(jnp.float32) for w in params['conv_w']]
    conv_bs = [b.reshape(1, -1).astype(jnp.float32) for b in params['conv_b']]
    wh_new = params['wh_new'].astype(jnp.float32)
    wh_gate = params['wh_gate'].astype(jnp.float32)
    bh_new = params['bh_new'].astype(jnp.float32)
    bh_gate = params['bh_gate'].astype(jnp.float32)
    wo = wo.astype(jnp.float32)
    bo = params['bo'].reshape(1, -1).astype(jnp.float32)

    kernel = functools.partial(_cnn_encoder_kernel,
                               filters=tuple(filters),
                               highway_layers=L)

    in_specs = [pl.BlockSpec((TB, T, D_in), lambda i: (i, 0, 0))]
    for (width, out_c) in filters:
        in_specs.append(pl.BlockSpec((width, D_in, out_c), lambda i: (0, 0, 0)))
    for (width, out_c) in filters:
        in_specs.append(pl.BlockSpec((1, out_c), lambda i: (0, 0)))
    in_specs += [
        pl.BlockSpec((L, F_dim, F_dim), lambda i: (0, 0, 0)),   # wh_new
        pl.BlockSpec((L, F_dim, F_dim), lambda i: (0, 0, 0)),   # wh_gate
        pl.BlockSpec((L, F_dim), lambda i: (0, 0)),             # bh_new
        pl.BlockSpec((L, F_dim), lambda i: (0, 0)),             # bh_gate
        pl.BlockSpec((F_dim, out_dim), lambda i: (0, 0)),       # wo
        pl.BlockSpec((1, out_dim), lambda i: (0, 0)),           # bo
    ]

    out = pl.pallas_call(
        kernel,
        out_shape=jax.ShapeDtypeStruct((B_pad, out_dim), jnp.float32),
        grid=(B_pad // TB,),
        in_specs=in_specs,
        out_specs=pl.BlockSpec((TB, out_dim), lambda i: (i, 0)),
        compiler_params=pltpu.CompilerParams(
            dimension_semantics=("parallel",)),
    )(x_pad, *conv_ws, *conv_bs, wh_new, wh_gate, bh_new, bh_gate, wo, bo)
    return out[:B]


def cnn_encoder_ref(x, params, *, filters, highway_layers):
    """Pure-JAX reference mirroring the PyTorch forward."""
    x = x.astype(jnp.float32)
    pooled = []
    for f, (width, out_c) in enumerate(filters):
        w = params['conv_w'][f]                    # (width, D_in, out_c)
        b = params['conv_b'][f]                    # (out_c,)
        t_out = x.shape[1] - width + 1
        y = sum(jnp.einsum('btd,do->bto', x[:, k:k + t_out, :], w[k])
                for k in range(width)) + b
        y = jax.nn.relu(jnp.max(y, axis=1))
        pooled.append(y)
    h = jnp.concatenate(pooled, axis=-1)
    for l in range(highway_layers):
        new = jax.nn.relu(h @ params['wh_new'][l] + params['bh_new'][l])
        g = jax.nn.sigmoid(h @ params['wh_gate'][l] + params['bh_gate'][l])
        h = g * h + (1.0 - g) * new
    return h @ params['wo'] + params['bo']


if __name__ == "__main__":
    # Module hyperparameters (small, consistent with the PyTorch module)
    B, T, D_in = 2, 16, 32
    filters = ((2, 16), (3, 16))          # (kernel_width, out_channels)
    out_dim = 32
    highway_layers = 1
    F_dim = sum(oc for _, oc in filters)  # final_dim

    key = jax.random.PRNGKey(0)
    ks = jax.random.split(key, 12)
    params = {
        # Conv1d weights stored as (width, in_dim, out_c) = torch weight transposed.
        'conv_w': [0.1 * jax.random.normal(ks[i], (w, D_in, oc), jnp.float32)
                   for i, (w, oc) in enumerate(filters)],
        'conv_b': [0.1 * jax.random.normal(ks[4 + i], (oc,), jnp.float32)
                   for i, (_, oc) in enumerate(filters)],
        # Highway Linear(F, 2F) split into "new" / "gate" halves (torch chunk order),
        # weights stored transposed: (L, F, F). Bias init matches reset_parameters:
        # new-half bias = 0, gate-half bias = 1.
        'wh_new': 0.02 * jax.random.normal(ks[8], (highway_layers, F_dim, F_dim), jnp.float32),
        'wh_gate': 0.02 * jax.random.normal(ks[9], (highway_layers, F_dim, F_dim), jnp.float32),
        'bh_new': jnp.zeros((highway_layers, F_dim), jnp.float32),
        'bh_gate': jnp.ones((highway_layers, F_dim), jnp.float32),
        # out_proj: weight std 0.02, bias 0, stored transposed (F, out_dim).
        'wo': 0.02 * jax.random.normal(ks[10], (F_dim, out_dim), jnp.float32),
        'bo': jnp.zeros((out_dim,), jnp.float32),
    }
    x = jax.random.normal(ks[11], (B, T, D_in), jnp.float32)

    out = cnn_encoder_pallas(x, params, filters=filters,
                             highway_layers=highway_layers)
    out = jax.block_until_ready(out)

    ref = cnn_encoder_ref(x, params, filters=filters,
                          highway_layers=highway_layers)
    assert out.shape == (B, out_dim), out.shape
    assert jnp.allclose(out, ref, rtol=1e-4, atol=1e-5), (out, ref)

    print("KERNEL_OK")
</pallas_src>

<mosaic_0001>
module attributes {stable_mosaic.version = 11 : i64} {
  func.func @_cnn_encoder_kernel(%arg0: i32, %arg1: memref<8x16x32xf32, #tpu.memory_space<vmem>>, %arg2: memref<2x32x16xf32, #tpu.memory_space<vmem>>, %arg3: memref<3x32x16xf32, #tpu.memory_space<vmem>>, %arg4: memref<1x16xf32, #tpu.memory_space<vmem>>, %arg5: memref<1x16xf32, #tpu.memory_space<vmem>>, %arg6: memref<1x32x32xf32, #tpu.memory_space<vmem>>, %arg7: memref<1x32x32xf32, #tpu.memory_space<vmem>>, %arg8: memref<1x32xf32, #tpu.memory_space<vmem>>, %arg9: memref<1x32xf32, #tpu.memory_space<vmem>>, %arg10: memref<32x32xf32, #tpu.memory_space<vmem>>, %arg11: memref<1x32xf32, #tpu.memory_space<vmem>>, %arg12: memref<8x32xf32, #tpu.memory_space<vmem>>) attributes {dimension_semantics = [#tpu.dimension_semantics<parallel>], iteration_bounds = array<i64: 1>, scalar_prefetch = 0 : i64, scratch_operands = 0 : i64, tpu.core_type = #tpu.core_type<tc>, window_params = [{transform_indices = @transform_0, window_bounds = array<i64: 8, 16, 32>}, {pipeline_mode = #tpu.pipeline_mode<synchronous>, transform_indices = @transform_1, window_bounds = array<i64: 2, 32, 16>}, {pipeline_mode = #tpu.pipeline_mode<synchronous>, transform_indices = @transform_2, window_bounds = array<i64: 3, 32, 16>}, {pipeline_mode = #tpu.pipeline_mode<synchronous>, transform_indices = @transform_3, window_bounds = array<i64: 1, 16>}, {pipeline_mode = #tpu.pipeline_mode<synchronous>, transform_indices = @transform_4, window_bounds = array<i64: 1, 16>}, {pipeline_mode = #tpu.pipeline_mode<synchronous>, transform_indices = @transform_5, window_bounds = array<i64: 1, 32, 32>}, {pipeline_mode = #tpu.pipeline_mode<synchronous>, transform_indices = @transform_6, window_bounds = array<i64: 1, 32, 32>}, {pipeline_mode = #tpu.pipeline_mode<synchronous>, transform_indices = @transform_7, window_bounds = array<i64: 1, 32>}, {pipeline_mode = #tpu.pipeline_mode<synchronous>, transform_indices = @transform_8, window_bounds = array<i64: 1, 32>}, {pipeline_mode = #tpu.pipeline_mode<synchronous>, transform_indices = @transform_9, window_bounds = array<i64: 32, 32>}, {pipeline_mode = #tpu.pipeline_mode<synchronous>, transform_indices = @transform_10, window_bounds = array<i64: 1, 32>}, {transform_indices = @transform_11, window_bounds = array<i64: 8, 32>}]} {
    %c0 = arith.constant 0 : index
    %c0_0 = arith.constant 0 : index
    %c0_1 = arith.constant 0 : index
    %0 = vector.load %arg1[%c0, %c0_0, %c0_1] : memref<8x16x32xf32, #tpu.memory_space<vmem>>, vector<8x16x32xf32>
    %c0_2 = arith.constant 0 : index
    %c0_3 = arith.constant 0 : index
    %c0_4 = arith.constant 0 : index
    %1 = vector.load %arg2[%c0_2, %c0_3, %c0_4] : memref<2x32x16xf32, #tpu.memory_space<vmem>>, vector<2x32x16xf32>
    %c0_5 = arith.constant 0 : index
    %c0_6 = arith.constant 0 : index
    %2 = vector.load %arg4[%c0_5, %c0_6] : memref<1x16xf32, #tpu.memory_space<vmem>>, vector<1x16xf32>
    %3 = vector.extract_strided_slice %0 {offsets = [0, 0, 0], sizes = [8, 15, 32], strides = [1, 1, 1]} : vector<8x16x32xf32> to vector<8x15x32xf32>
    %4 = vector.extract_strided_slice %1 {offsets = [0, 0, 0], sizes = [1, 32, 16], strides = [1, 1, 1]} : vector<2x32x16xf32> to vector<1x32x16xf32>
    %5 = vector.shape_cast %4 : vector<1x32x16xf32> to vector<32x16xf32>
    %6 = vector.shape_cast %5 : vector<32x16xf32> to vector<1x32x16xf32>
    %7 = vector.shape_cast %6 : vector<1x32x16xf32> to vector<1x32x16xf32>
    %8 = vector.broadcast %7 : vector<1x32x16xf32> to vector<8x32x16xf32>
    "tpu.trace_start"() <{level = 10 : i32, message = "btd,bdo->bto"}> : () -> ()
    %cst = arith.constant dense<0.000000e+00> : vector<8x15x16xf32>
    %9 = tpu.matmul %3, %8, %cst {dimension_numbers = #tpu.dot_dimension_numbers<[2], [1], [1], [2], [0, 0, 0, 1, 1, 2], [0], [0]>} : vector<8x15x32xf32>, vector<8x32x16xf32>, vector<8x15x16xf32> -> vector<8x15x16xf32>
    "tpu.trace_stop"() : () -> ()
    %10 = vector.extract_strided_slice %0 {offsets = [0, 1, 0], sizes = [8, 15, 32], strides = [1, 1, 1]} : vector<8x16x32xf32> to vector<8x15x32xf32>
    %11 = vector.extract_strided_slice %1 {offsets = [1, 0, 0], sizes = [1, 32, 16], strides = [1, 1, 1]} : vector<2x32x16xf32> to vector<1x32x16xf32>
    %12 = vector.shape_cast %11 : vector<1x32x16xf32> to vector<32x16xf32>
    %13 = vector.shape_cast %12 : vector<32x16xf32> to vector<1x32x16xf32>
    %14 = vector.shape_cast %13 : vector<1x32x16xf32> to vector<1x32x16xf32>
    %15 = vector.broadcast %14 : vector<1x32x16xf32> to vector<8x32x16xf32>
    "tpu.trace_start"() <{level = 10 : i32, message = "btd,bdo->bto"}> : () -> ()
    %cst_7 = arith.constant dense<0.000000e+00> : vector<8x15x16xf32>
    %16 = tpu.matmul %10, %15, %cst_7 {dimension_numbers = #tpu.dot_dimension_numbers<[2], [1], [1], [2], [0, 0, 0, 1, 1, 2], [0], [0]>} : vector<8x15x32xf32>, vector<8x32x16xf32>, vector<8x15x16xf32> -> vector<8x15x16xf32>
    "tpu.trace_stop"() : () -> ()
    %17 = arith.addf %9, %16 : vector<8x15x16xf32>
    %cst_8 = arith.constant dense<0xFF800000> : vector<8x16xf32>
    %18 = vector.multi_reduction <maximumf>, %17, %cst_8 [1] : vector<8x15x16xf32> to vector<8x16xf32>
    %19 = vector.broadcast %2 : vector<1x16xf32> to vector<8x16xf32>
    %20 = arith.addf %18, %19 : vector<8x16xf32>
    %cst_9 = arith.constant 0.000000e+00 : f32
    %21 = vector.broadcast %cst_9 : f32 to vector<8x16xf32>
    %22 = arith.maximumf %20, %21 : vector<8x16xf32>
    %c0_10 = arith.constant 0 : index
    %c0_11 = arith.constant 0 : index
    %c0_12 = arith.constant 0 : index
    %23 = vector.load %arg3[%c0_10, %c0_11, %c0_12] : memref<3x32x16xf32, #tpu.memory_space<vmem>>, vector<3x32x16xf32>
    %c0_13 = arith.constant 0 : index
    %c0_14 = arith.constant 0 : index
    %24 = vector.load %arg5[%c0_13, %c0_14] : memref<1x16xf32, #tpu.memory_space<vmem>>, vector<1x16xf32>
    %25 = vector.extract_strided_slice %0 {offsets = [0, 0, 0], sizes = [8, 14, 32], strides = [1, 1, 1]} : vector<8x16x32xf32> to vector<8x14x32xf32>
    %26 = vector.extract_strided_slice %23 {offsets = [0, 0, 0], sizes = [1, 32, 16], strides = [1, 1, 1]} : vector<3x32x16xf32> to vector<1x32x16xf32>
    %27 = vector.shape_cast %26 : vector<1x32x16xf32> to vector<32x16xf32>
    %28 = vector.shape_cast %27 : vector<32x16xf32> to vector<1x32x16xf32>
    %29 = vector.shape_cast %28 : vector<1x32x16xf32> to vector<1x32x16xf32>
    %30 = vector.broadcast %29 : vector<1x32x16xf32> to vector<8x32x16xf32>
    "tpu.trace_start"() <{level = 10 : i32, message = "btd,bdo->bto"}> : () -> ()
    %cst_15 = arith.constant dense<0.000000e+00> : vector<8x14x16xf32>
    %31 = tpu.matmul %25, %30, %cst_15 {dimension_numbers = #tpu.dot_dimension_numbers<[2], [1], [1], [2], [0, 0, 0, 1, 1, 2], [0], [0]>} : vector<8x14x32xf32>, vector<8x32x16xf32>, vector<8x14x16xf32> -> vector<8x14x16xf32>
    "tpu.trace_stop"() : () -> ()
    %32 = vector.extract_strided_slice %0 {offsets = [0, 1, 0], sizes = [8, 14, 32], strides = [1, 1, 1]} : vector<8x16x32xf32> to vector<8x14x32xf32>
    %33 = vector.extract_strided_slice %23 {offsets = [1, 0, 0], sizes = [1, 32, 16], strides = [1, 1, 1]} : vector<3x32x16xf32> to vector<1x32x16xf32>
    %34 = vector.shape_cast %33 : vector<1x32x16xf32> to vector<32x16xf32>
    %35 = vector.shape_cast %34 : vector<32x16xf32> to vector<1x32x16xf32>
    %36 = vector.shape_cast %35 : vector<1x32x16xf32> to vector<1x32x16xf32>
    %37 = vector.broadcast %36 : vector<1x32x16xf32> to vector<8x32x16xf32>
    "tpu.trace_start"() <{level = 10 : i32, message = "btd,bdo->bto"}> : () -> ()
    %cst_16 = arith.constant dense<0.000000e+00> : vector<8x14x16xf32>
    %38 = tpu.matmul %32, %37, %cst_16 {dimension_numbers = #tpu.dot_dimension_numbers<[2], [1], [1], [2], [0, 0, 0, 1, 1, 2], [0], [0]>} : vector<8x14x32xf32>, vector<8x32x16xf32>, vector<8x14x16xf32> -> vector<8x14x16xf32>
    "tpu.trace_stop"() : () -> ()
    %39 = arith.addf %31, %38 : vector<8x14x16xf32>
    %40 = vector.extract_strided_slice %0 {offsets = [0, 2, 0], sizes = [8, 14, 32], strides = [1, 1, 1]} : vector<8x16x32xf32> to vector<8x14x32xf32>
    %41 = vector.extract_strided_slice %23 {offsets = [2, 0, 0], sizes = [1, 32, 16], strides = [1, 1, 1]} : vector<3x32x16xf32> to vector<1x32x16xf32>
    %42 = vector.shape_cast %41 : vector<1x32x16xf32> to vector<32x16xf32>
    %43 = vector.shape_cast %42 : vector<32x16xf32> to vector<1x32x16xf32>
    %44 = vector.shape_cast %43 : vector<1x32x16xf32> to vector<1x32x16xf32>
    %45 = vector.broadcast %44 : vector<1x32x16xf32> to vector<8x32x16xf32>
    "tpu.trace_start"() <{level = 10 : i32, message = "btd,bdo->bto"}> : () -> ()
    %cst_17 = arith.constant dense<0.000000e+00> : vector<8x14x16xf32>
    %46 = tpu.matmul %40, %45, %cst_17 {dimension_numbers = #tpu.dot_dimension_numbers<[2], [1], [1], [2], [0, 0, 0, 1, 1, 2], [0], [0]>} : vector<8x14x32xf32>, vector<8x32x16xf32>, vector<8x14x16xf32> -> vector<8x14x16xf32>
    "tpu.trace_stop"() : () -> ()
    %47 = arith.addf %39, %46 : vector<8x14x16xf32>
    %cst_18 = arith.constant dense<0xFF800000> : vector<8x16xf32>
    %48 = vector.multi_reduction <maximumf>, %47, %cst_18 [1] : vector<8x14x16xf32> to vector<8x16xf32>
    %49 = vector.broadcast %24 : vector<1x16xf32> to vector<8x16xf32>
    %50 = arith.addf %48, %49 : vector<8x16xf32>
    %cst_19 = arith.constant 0.000000e+00 : f32
    %51 = vector.broadcast %cst_19 : f32 to vector<8x16xf32>
    %52 = arith.maximumf %50, %51 : vector<8x16xf32>
    %53 = tpu.concatenate %22, %52 in 1 : vector<8x16xf32>, vector<8x16xf32> -> vector<8x32xf32>
    %c0_20 = arith.constant 0 : index
    %c0_21 = arith.constant 0 : index
    %c0_22 = arith.constant 0 : index
    %54 = vector.load %arg6[%c0_20, %c0_21, %c0_22] : memref<1x32x32xf32, #tpu.memory_space<vmem>>, vector<1x32x32xf32>
    %c0_23 = arith.constant 0 : index
    %c0_24 = arith.constant 0 : index
    %c0_25 = arith.constant 0 : index
    %55 = vector.load %arg7[%c0_23, %c0_24, %c0_25] : memref<1x32x32xf32, #tpu.memory_space<vmem>>, vector<1x32x32xf32>
    %c0_26 = arith.constant 0 : index
    %c0_27 = arith.constant 0 : index
    %56 = vector.load %arg8[%c0_26, %c0_27] : memref<1x32xf32, #tpu.memory_space<vmem>>, vector<1x32xf32>
    %c0_28 = arith.constant 0 : index
    %c0_29 = arith.constant 0 : index
    %57 = vector.load %arg9[%c0_28, %c0_29] : memref<1x32xf32, #tpu.memory_space<vmem>>, vector<1x32xf32>
    %58 = vector.shape_cast %54 : vector<1x32x32xf32> to vector<32x32xf32>
    %cst_30 = arith.constant dense<0.000000e+00> : vector<8x32xf32>
    %59 = tpu.matmul %53, %58, %cst_30 {dimension_numbers = #tpu.dot_dimension_numbers<[1], [0], [0], [1], [0, 0, 1, 1], [], []>} : vector<8x32xf32>, vector<32x32xf32>, vector<8x32xf32> -> vector<8x32xf32>
    %60 = vector.shape_cast %56 : vector<1x32xf32> to vector<32xf32>
    %61 = vector.shape_cast %60 : vector<32xf32> to vector<1x32xf32>
    %62 = vector.broadcast %61 : vector<1x32xf32> to vector<8x32xf32>
    %63 = arith.addf %59, %62 : vector<8x32xf32>
    %64 = vector.shape_cast %55 : vector<1x32x32xf32> to vector<32x32xf32>
    %cst_31 = arith.constant dense<0.000000e+00> : vector<8x32xf32>
    %65 = tpu.matmul %53, %64, %cst_31 {dimension_numbers = #tpu.dot_dimension_numbers<[1], [0], [0], [1], [0, 0, 1, 1], [], []>} : vector<8x32xf32>, vector<32x32xf32>, vector<8x32xf32> -> vector<8x32xf32>
    %66 = vector.shape_cast %57 : vector<1x32xf32> to vector<32xf32>
    %67 = vector.shape_cast %66 : vector<32xf32> to vector<1x32xf32>
    %68 = vector.broadcast %67 : vector<1x32xf32> to vector<8x32xf32>
    %69 = arith.addf %65, %68 : vector<8x32xf32>
    %cst_32 = arith.constant 0.000000e+00 : f32
    %70 = vector.broadcast %cst_32 : f32 to vector<8x32xf32>
    %71 = arith.maximumf %63, %70 : vector<8x32xf32>
    %cst_33 = arith.constant 0.000000e+00 : f32
    %72 = vector.broadcast %cst_33 : f32 to vector<8x32xf32>
    %73 = arith.subf %72, %69 : vector<8x32xf32>
    %74 = math.exp %73 : vector<8x32xf32>
    %cst_34 = arith.constant 1.000000e+00 : f32
    %75 = vector.broadcast %cst_34 : f32 to vector<8x32xf32>
    %76 = arith.addf %75, %74 : vector<8x32xf32>
    %cst_35 = arith.constant 1.000000e+00 : f32
    %77 = vector.broadcast %cst_35 : f32 to vector<8x32xf32>
    %78 = arith.divf %77, %76 : vector<8x32xf32>
    %79 = arith.mulf %78, %53 : vector<8x32xf32>
    %cst_36 = arith.constant 1.000000e+00 : f32
    %80 = vector.broadcast %cst_36 : f32 to vector<8x32xf32>
    %81 = arith.subf %80, %78 : vector<8x32xf32>
    %82 = arith.mulf %81, %71 : vector<8x32xf32>
    %83 = arith.addf %79, %82 : vector<8x32xf32>
    %c0_37 = arith.constant 0 : index
    %c0_38 = arith.constant 0 : index
    %84 = vector.load %arg10[%c0_37, %c0_38] : memref<32x32xf32, #tpu.memory_space<vmem>>, vector<32x32xf32>
    %cst_39 = arith.constant dense<0.000000e+00> : vector<8x32xf32>
    %85 = tpu.matmul %83, %84, %cst_39 {dimension_numbers = #tpu.dot_dimension_numbers<[1], [0], [0], [1], [0, 0, 1, 1], [], []>} : vector<8x32xf32>, vector<32x32xf32>, vector<8x32xf32> -> vector<8x32xf32>
    %c0_40 = arith.constant 0 : index
    %c0_41 = arith.constant 0 : index
    %86 = vector.load %arg11[%c0_40, %c0_41] : memref<1x32xf32, #tpu.memory_space<vmem>>, vector<1x32xf32>
    %87 = vector.broadcast %86 : vector<1x32xf32> to vector<8x32xf32>
    %88 = arith.addf %85, %87 : vector<8x32xf32>
    %c0_42 = arith.constant 0 : index
    %c0_43 = arith.constant 0 : index
    %89 = vector.load %arg12[%c0_42, %c0_43] : memref<8x32xf32, #tpu.memory_space<vmem>>, vector<8x32xf32>
    tpu.vector_store %arg12[%c0_42, %c0_43], %88 {strides = array<i32>} : memref<8x32xf32, #tpu.memory_space<vmem>>, vector<8x32xf32>,
    return
  }
  func.func @transform_0(%arg0: i32) -> (i32, i32, i32) {
    %c0_i32 = arith.constant 0 : i32
    %c0_i32_0 = arith.constant 0 : i32
    %c0_i32_1 = arith.constant 0 : i32
    return %arg0, %c0_i32, %c0_i32_0 : i32, i32, i32
  }
  func.func @transform_1(%arg0: i32) -> (i32, i32, i32) {
    %c0_i32 = arith.constant 0 : i32
    %c0_i32_0 = arith.constant 0 : i32
    %c0_i32_1 = arith.constant 0 : i32
    %c0_i32_2 = arith.constant 0 : i32
    return %c0_i32, %c0_i32_0, %c0_i32_1 : i32, i32, i32
  }
  func.func @transform_2(%arg0: i32) -> (i32, i32, i32) {
    %c0_i32 = arith.constant 0 : i32
    %c0_i32_0 = arith.constant 0 : i32
    %c0_i32_1 = arith.constant 0 : i32
    %c0_i32_2 = arith.constant 0 : i32
    return %c0_i32, %c0_i32_0, %c0_i32_1 : i32, i32, i32
  }
  func.func @transform_3(%arg0: i32) -> (i32, i32) {
    %c0_i32 = arith.constant 0 : i32
    %c0_i32_0 = arith.constant 0 : i32
    %c0_i32_1 = arith.constant 0 : i32
    return %c0_i32, %c0_i32_0 : i32, i32
  }
  func.func @transform_4(%arg0: i32) -> (i32, i32) {
    %c0_i32 = arith.constant 0 : i32
    %c0_i32_0 = arith.constant 0 : i32
    %c0_i32_1 = arith.constant 0 : i32
    return %c0_i32, %c0_i32_0 : i32, i32
  }
  func.func @transform_5(%arg0: i32) -> (i32, i32, i32) {
    %c0_i32 = arith.constant 0 : i32
    %c0_i32_0 = arith.constant 0 : i32
    %c0_i32_1 = arith.constant 0 : i32
    %c0_i32_2 = arith.constant 0 : i32
    return %c0_i32, %c0_i32_0, %c0_i32_1 : i32, i32, i32
  }
  func.func @transform_6(%arg0: i32) -> (i32, i32, i32) {
    %c0_i32 = arith.constant 0 : i32
    %c0_i32_0 = arith.constant 0 : i32
    %c0_i32_1 = arith.constant 0 : i32
    %c0_i32_2 = arith.constant 0 : i32
    return %c0_i32, %c0_i32_0, %c0_i32_1 : i32, i32, i32
  }
  func.func @transform_7(%arg0: i32) -> (i32, i32) {
    %c0_i32 = arith.constant 0 : i32
    %c0_i32_0 = arith.constant 0 : i32
    %c0_i32_1 = arith.constant 0 : i32
    return %c0_i32, %c0_i32_0 : i32, i32
  }
  func.func @transform_8(%arg0: i32) -> (i32, i32) {
    %c0_i32 = arith.constant 0 : i32
    %c0_i32_0 = arith.constant 0 : i32
    %c0_i32_1 = arith.constant 0 : i32
    return %c0_i32, %c0_i32_0 : i32, i32
  }
  func.func @transform_9(%arg0: i32) -> (i32, i32) {
    %c0_i32 = arith.constant 0 : i32
    %c0_i32_0 = arith.constant 0 : i32
    %c0_i32_1 = arith.constant 0 : i32
    return %c0_i32, %c0_i32_0 : i32, i32
  }
  func.func @transform_10(%arg0: i32) -> (i32, i32) {
    %c0_i32 = arith.constant 0 : i32
    %c0_i32_0 = arith.constant 0 : i32
    %c0_i32_1 = arith.constant 0 : i32
    return %c0_i32, %c0_i32_0 : i32, i32
  }
  func.func @transform_11(%arg0: i32) -> (i32, i32) {
    %c0_i32 = arith.constant 0 : i32
    %c0_i32_0 = arith.constant 0 : i32
    return %arg0, %c0_i32 : i32, i32
  }
}

</mosaic_0001>

<llo_original>
// kernel: tpu_custom_call.1
$region0: #{tpu_custom_call.1}
  #allocation0 [shape = 'u32[]', space=smem, size = 0x4, offset = 0x4, fixed_abs, tag = 'smem constant byte address 0x4 - core index']
  #allocation1 [shape = 'u32[72,128]{1,0:T(1,128)}', space=vmem, size = 0x9000, scoped, tag = 'internal scratch']
  %s0 = inlined_call_operand.vmem [shape: f32[8,16,32], index: 0, kind: input, shape index: {}]
  %s1 = inlined_call_operand.vmem [shape: f32[2,32,16], index: 1, kind: input, shape index: {}]
  %s2 = inlined_call_operand.vmem [shape: f32[3,32,16], index: 2, kind: input, shape index: {}]
  %s3 = inlined_call_operand.vmem [shape: f32[1,16], index: 3, kind: input, shape index: {}]
  %s4 = inlined_call_operand.vmem [shape: f32[1,16], index: 4, kind: input, shape index: {}]
  %s5 = inlined_call_operand.vmem [shape: f32[1,32,32], index: 5, kind: input, shape index: {}]
  %s6 = inlined_call_operand.vmem [shape: f32[1,32,32], index: 6, kind: input, shape index: {}]
  %s7 = inlined_call_operand.vmem [shape: f32[1,32], index: 7, kind: input, shape index: {}]
  %s8 = inlined_call_operand.vmem [shape: f32[1,32], index: 8, kind: input, shape index: {}]
  %s9 = inlined_call_operand.hbm [shape: f32[32,32], index: 9, kind: input, shape index: {}]
  %s10 = inlined_call_operand.vmem [shape: f32[1,32], index: 10, kind: input, shape index: {}]
  %s11 = inlined_call_operand.hbm [shape: f32[8,32], index: 11, kind: output, shape index: {}]
  %s12 = sld [smem:[#allocation0]]
  $region58: #{tpu_custom_call.1} parent=0
    _
  %s14 = ssub.s32 1, %s12
  %s15 = scalar_select 0, %s14, %s12
  $region1: #{tpu_custom_call.1} parent=0
    #allocation2 [shape = 'u8[16384]{0}', space=vmem, size = 0x4000, scoped, tag = 'input window, operand 9, single buffered']
    #allocation3 [shape = 's32[1]{0}', space=sflag, size = 0x4, scoped, tag = 'scoped memory for tpu_custom_call.1']
    #allocation4 [shape = 's32[1]{0}', space=sflag, size = 0x4, scoped, tag = 'scoped memory for tpu_custom_call.1']
    #allocation5 [shape = 'u8[4096]{0}', space=vmem, size = 0x1000, scoped, tag = 'output window, operand 0, single buffered']
    %16 = vsyncpa [#allocation3], 0
    %17 = vsyncpa [#allocation4], 0
    // Predicated region
    $region2: #{tpu_custom_call.1} parent=1 // pred_check
      _
    $region3: #{tpu_custom_call.1} parent=1 // pred_check_branch
      %19 = sbr.rel (0) target = $region5
    $region4: #{tpu_custom_call.1} parent=1 // pred_region
      _
    $region5: #{tpu_custom_call.1} parent=1 // pred_fallthru
      _
    // Predicated region
    $region6: #{tpu_custom_call.1} parent=1 // pred_check
      _
    $region7: #{tpu_custom_call.1} parent=1 // pred_check_branch
      %21 = sbr.rel (0) target = $region9
    $region8: #{tpu_custom_call.1} parent=1 // pred_region
      _
    $region9: #{tpu_custom_call.1} parent=1 // pred_fallthru
      _
    // Predicated region
    $region10: #{tpu_custom_call.1} parent=1 // pred_check
      _
    $region11: #{tpu_custom_call.1} parent=1 // pred_check_branch
      %23 = sbr.rel (0) target = $region13
    $region12: #{tpu_custom_call.1} parent=1 // pred_region
      _
    $region13: #{tpu_custom_call.1} parent=1 // pred_fallthru
      _
    // Predicated region
    $region14: #{tpu_custom_call.1} parent=1 // pred_check
      _
    $region15: #{tpu_custom_call.1} parent=1 // pred_check_branch
      %25 = sbr.rel (0) target = $region17
    $region16: #{tpu_custom_call.1} parent=1 // pred_region
      _
    $region17: #{tpu_custom_call.1} parent=1 // pred_fallthru
      _
    // Predicated region
    $region18: #{tpu_custom_call.1} parent=1 // pred_check
      _
    $region19: #{tpu_custom_call.1} parent=1 // pred_check_branch
      %27 = sbr.rel (0) target = $region21
    $region20: #{tpu_custom_call.1} parent=1 // pred_region
      _
    $region21: #{tpu_custom_call.1} parent=1 // pred_fallthru
      _
    // Predicated region
    $region22: #{tpu_custom_call.1} parent=1 // pred_check
      _
    $region23: #{tpu_custom_call.1} parent=1 // pred_check_branch
      %29 = sbr.rel (0) target = $region25
    $region24: #{tpu_custom_call.1} parent=1 // pred_region
      _
    $region25: #{tpu_custom_call.1} parent=1 // pred_fallthru
      _
    // Predicated region
    $region26: #{tpu_custom_call.1} parent=1 // pred_check
      _
    $region27: #{tpu_custom_call.1} parent=1 // pred_check_branch
      %31 = sbr.rel (0) target = $region29
    $region28: #{tpu_custom_call.1} parent=1 // pred_region
      _
    $region29: #{tpu_custom_call.1} parent=1 // pred_fallthru
      _
    // Predicated region
    $region30: #{tpu_custom_call.1} parent=1 // pred_check
      _
    $region31: #{tpu_custom_call.1} parent=1 // pred_check_branch
      %33 = sbr.rel (0) target = $region33
    $region32: #{tpu_custom_call.1} parent=1 // pred_region
      _
    $region33: #{tpu_custom_call.1} parent=1 // pred_fallthru
      _
    // Predicated region
    $region34: #{tpu_custom_call.1} parent=1 // pred_check
      _
    $region35: #{tpu_custom_call.1} parent=1 // pred_check_branch
      %35 = sbr.rel (0) target = $region37
    $region36: #{tpu_custom_call.1} parent=1 // pred_region
      _
    $region37: #{tpu_custom_call.1} parent=1 // pred_fallthru
      _
    // Predicated region
    $region38: #{tpu_custom_call.1} parent=1 // pred_check
      _
    $region39: #{tpu_custom_call.1} parent=1 // pred_check_branch
      %37 = sbr.rel (0) target = $region41
    $region40: #{tpu_custom_call.1} parent=1 // pred_region
      %39 = vsyncadd [#allocation3], 0
      %s40 = sshll.u32 %s9, 4
      %s41 = int_to_ptr.hbm [resolvable:$true] %s40
      %s42 = sshll.u32 [#allocation2], 4
      %s43 = int_to_ptr.vmem [resolvable:$true] %s42
      %48 = dma.hbm_to_vmem [thread:$0]  %s41, 512, %s43, [#allocation3], 128, 128, 8
    $region41: #{tpu_custom_call.1} parent=1 // pred_fallthru
      _
    // Predicated region
    $region42: #{tpu_custom_call.1} parent=1 // pred_check
      _
    $region43: #{tpu_custom_call.1} parent=1 // pred_check_branch
      %50 = sbr.rel (0) target = $region45
    $region44: #{tpu_custom_call.1} parent=1 // pred_region
      _
    $region45: #{tpu_custom_call.1} parent=1 // pred_fallthru
      _
    // Predicated region
    $region46: #{tpu_custom_call.1} parent=1 // pred_check
      _
    $region47: #{tpu_custom_call.1} parent=1 // pred_check_branch
      %52 = sbr.rel (0) target = $region49
    $region48: #{tpu_custom_call.1} parent=1 // pred_region
      %54 = dma.done [#allocation3], 512
    $region49: #{tpu_custom_call.1} parent=1 // pred_fallthru
      _
    %v55 = vld [vmem:[%s0] sm:$0xff]
    %v56 = vld [vmem:[%s0 + $0x8] sm:$0xff]
    %v57 = vld [vmem:[%s0 + $0x10] sm:$0xff]
    %v58 = vld [vmem:[%s0 + $0x18] sm:$0xff]
    %v59 = vld [vmem:[%s0 + $0x20] sm:$0xff]
    %v60 = vld [vmem:[%s0 + $0x28] sm:$0xff]
    %v61 = vld [vmem:[%s0 + $0x30] sm:$0xff]
    %v62 = vld [vmem:[%s0 + $0x38] sm:$0xff]
    %v63 = vld [vmem:[%s0 + $0x40] sm:$0xff]
    %v64 = vld [vmem:[%s0 + $0x48] sm:$0xff]
    %v65 = vld [vmem:[%s0 + $0x50] sm:$0xff]
    %v66 = vld [vmem:[%s0 + $0x58] sm:$0xff]
    %v67 = vld [vmem:[%s0 + $0x60] sm:$0xff]
    %v68 = vld [vmem:[%s0 + $0x68] sm:$0xff]
    %v69 = vld [vmem:[%s0 + $0x70] sm:$0xff]
    %v70 = vld [vmem:[%s0 + $0x78] sm:$0xff]
    %v71 = vld [vmem:[%s1] sm:$0xff]
    %v72 = vld [vmem:[%s1 + $0x8] sm:$0xff]
    %v73 = vld [vmem:[%s1 + $0x10] sm:$0xff]
    %v74 = vld [vmem:[%s1 + $0x18] sm:$0xff]
    %v75 = vld [vmem:[%s1 + $0x20] sm:$0xff]
    %v76 = vld [vmem:[%s1 + $0x28] sm:$0xff]
    %v77 = vld [vmem:[%s1 + $0x30] sm:$0xff]
    %v78 = vld [vmem:[%s1 + $0x38] sm:$0xff]
    %v79 = vld [vmem:[%s3] sm:$0x1]
    %vm82 = vcmask 1046528
    %v83 = vrot.slane %v55, 1
    %v84 = vrot.slane %v56, 1
    %v85 = vsel %vm82, %v83, %v84
    %vm86 = vcmask 261120
    %v87 = vsel %vm86, %v85, 0
    %v89 = vsel %vm86, %v84, 0
    %91 = vmatpush.msra.mxu0 0.0
    %92 = vmatpush.msra.mxu0 0.0
    %93 = vmatpush.msra.mxu0 0.0
    %94 = vmatpush.msra.mxu0 0.0
    %95 = vmatpush.msra.mxu0 0.0
    %96 = vmatpush.msra.mxu0 0.0
    %97 = vmatpush.msra.mxu0 0.0
    %98 = vmatpush.msra.mxu0 0.0
    %99 = vmatpush.msra.mxu0 0.0
    %100 = vmatpush.msra.mxu0 0.0
    %101 = vmatpush.msra.mxu0 0.0
    %102 = vmatpush.msra.mxu0 0.0
    %103 = vmatpush.msra.mxu0 %v78
    %104 = vmatpush.msra.mxu0 %v77
    %105 = vmatpush.msra.mxu0 %v76
    %106 = vmatpush.msra.mxu0 %v75
    %107 = vmatmul.f32.gmra.mxu0 %v87
    %v108 = vpop.f32.mrf.mxu0
    %v109 = vadd.f32 0.0, %v108
    %110 = vmatmul.f32.gmra.mxu0 %v89
    %v111 = vpop.f32.mrf.mxu0
    %v112 = vadd.f32 0.0, %v111
    %113 = vdwg.mxu0
    %v116 = vrot.slane %v57, 1
    %v117 = vrot.slane %v58, 1
    %v118 = vsel %vm82, %v116, %v117
    %v119 = vsel %vm86, %v118, 0
    %v121 = vsel %vm86, %v117, 0
    %123 = vmatpush.msra.mxu0 0.0
    %124 = vmatpush.msra.mxu0 0.0
    %125 = vmatpush.msra.mxu0 0.0
    %126 = vmatpush.msra.mxu0 0.0
    %127 = vmatpush.msra.mxu0 0.0
    %128 = vmatpush.msra.mxu0 0.0
    %129 = vmatpush.msra.mxu0 0.0
    %130 = vmatpush.msra.mxu0 0.0
    %131 = vmatpush.msra.mxu0 0.0
    %132 = vmatpush.msra.mxu0 0.0
    %133 = vmatpush.msra.mxu0 0.0
    %134 = vmatpush.msra.mxu0 0.0
    %135 = vmatpush.msra.mxu0 %v78
    %136 = vmatpush.msra.mxu0 %v77
    %137 = vmatpush.msra.mxu0 %v76
    %138 = vmatpush.msra.mxu0 %v75
    %139 = vmatmul.f32.gmra.mxu0 %v119
    %v140 = vpop.f32.mrf.mxu0
    %v141 = vadd.f32 0.0, %v140
    %142 = vmatmul.f32.gmra.mxu0 %v121
    %v143 = vpop.f32.mrf.mxu0
    %v144 = vadd.f32 0.0, %v143
    %145 = vdwg.mxu0
    %v148 = vrot.slane %v59, 1
    %v149 = vrot.slane %v60, 1
    %v150 = vsel %vm82, %v148, %v149
    %v151 = vsel %vm86, %v150, 0
    %v153 = vsel %vm86, %v149, 0
    %155 = vmatpush.msra.mxu0 0.0
    %156 = vmatpush.msra.mxu0 0.0
    %157 = vmatpush.msra.mxu0 0.0
    %158 = vmatpush.msra.mxu0 0.0
    %159 = vmatpush.msra.mxu0 0.0
    %160 = vmatpush.msra.mxu0 0.0
    %161 = vmatpush.msra.mxu0 0.0
    %162 = vmatpush.msra.mxu0 0.0
    %163 = vmatpush.msra.mxu0 0.0
    %164 = vmatpush.msra.mxu0 0.0
    %165 = vmatpush.msra.mxu0 0.0
    %166 = vmatpush.msra.mxu0 0.0
    %167 = vmatpush.msra.mxu0 %v78
    %168 = vmatpush.msra.mxu0 %v77
    %169 = vmatpush.msra.mxu0 %v76
    %170 = vmatpush.msra.mxu0 %v75
    %171 = vmatmul.f32.gmra.mxu0 %v151
    %v172 = vpop.f32.mrf.mxu0
    %v173 = vadd.f32 0.0, %v172
    %174 = vmatmul.f32.gmra.mxu0 %v153
    %v175 = vpop.f32.mrf.mxu0
    %v176 = vadd.f32 0.0, %v175
    %177 = vdwg.mxu0
    %v180 = vrot.slane %v61, 1
    %v181 = vrot.slane %v62, 1
    %v182 = vsel %vm82, %v180, %v181
    %v183 = vsel %vm86, %v182, 0
    %v185 = vsel %vm86, %v181, 0
    %187 = vmatpush.msra.mxu0 0.0
    %188 = vmatpush.msra.mxu0 0.0
    %189 = vmatpush.msra.mxu0 0.0
    %190 = vmatpush.msra.mxu0 0.0
    %191 = vmatpush.msra.mxu0 0.0
    %192 = vmatpush.msra.mxu0 0.0
    %193 = vmatpush.msra.mxu0 0.0
    %194 = vmatpush.msra.mxu0 0.0
    %195 = vmatpush.msra.mxu0 0.0
    %196 = vmatpush.msra.mxu0 0.0
    %197 = vmatpush.msra.mxu0 0.0
    %198 = vmatpush.msra.mxu0 0.0
    %199 = vmatpush.msra.mxu0 %v78
    %200 = vmatpush.msra.mxu0 %v77
    %201 = vmatpush.msra.mxu0 %v76
    %202 = vmatpush.msra.mxu0 %v75
    %203 = vmatmul.f32.gmra.mxu0 %v183
    %v204 = vpop.f32.mrf.mxu0
    %v205 = vadd.f32 0.0, %v204
    %206 = vmatmul.f32.gmra.mxu0 %v185
    %v207 = vpop.f32.mrf.mxu0
    %v208 = vadd.f32 0.0, %v207
    %209 = vdwg.mxu0
    %v212 = vrot.slane %v63, 1
    %v213 = vrot.slane %v64, 1
    %v214 = vsel %vm82, %v212, %v213
    %v215 = vsel %vm86, %v214, 0
    %v217 = vsel %vm86, %v213, 0
    %219 = vmatpush.msra.mxu0 0.0
    %220 = vmatpush.msra.mxu0 0.0
    %221 = vmatpush.msra.mxu0 0.0
    %222 = vmatpush.msra.mxu0 0.0
    %223 = vmatpush.msra.mxu0 0.0
    %224 = vmatpush.msra.mxu0 0.0
    %225 = vmatpush.msra.mxu0 0.0
    %226 = vmatpush.msra.mxu0 0.0
    %227 = vmatpush.msra.mxu0 0.0
    %228 = vmatpush.msra.mxu0 0.0
    %229 = vmatpush.msra.mxu0 0.0
    %230 = vmatpush.msra.mxu0 0.0
    %231 = vmatpush.msra.mxu0 %v78
    %232 = vmatpush.msra.mxu0 %v77
    %233 = vmatpush.msra.mxu0 %v76
    %234 = vmatpush.msra.mxu0 %v75
    %235 = vmatmul.f32.gmra.mxu0 %v215
    %v236 = vpop.f32.mrf.mxu0
    %v237 = vadd.f32 0.0, %v236
    %238 = vmatmul.f32.gmra.mxu0 %v217
    %v239 = vpop.f32.mrf.mxu0
    %v240 = vadd.f32 0.0, %v239
    %241 = vdwg.mxu0
    %v244 = vrot.slane %v65, 1
    %v245 = vrot.slane %v66, 1
    %v246 = vsel %vm82, %v244, %v245
    %v247 = vsel %vm86, %v246, 0
    %v249 = vsel %vm86, %v245, 0
    %251 = vmatpush.msra.mxu0 0.0
    %252 = vmatpush.msra.mxu0 0.0
    %253 = vmatpush.msra.mxu0 0.0
    %254 = vmatpush.msra.mxu0 0.0
    %255 = vmatpush.msra.mxu0 0.0
    %256 = vmatpush.msra.mxu0 0.0
    %257 = vmatpush.msra.mxu0 0.0
    %258 = vmatpush.msra.mxu0 0.0
    %259 = vmatpush.msra.mxu0 0.0
    %260 = vmatpush.msra.mxu0 0.0
    %261 = vmatpush.msra.mxu0 0.0
    %262 = vmatpush.msra.mxu0 0.0
    %263 = vmatpush.msra.mxu0 %v78
    %264 = vmatpush.msra.mxu0 %v77
    %265 = vmatpush.msra.mxu0 %v76
    %266 = vmatpush.msra.mxu0 %v75
    %267 = vmatmul.f32.gmra.mxu0 %v247
    %v268 = vpop.f32.mrf.mxu0
    %v269 = vadd.f32 0.0, %v268
    %270 = vmatmul.f32.gmra.mxu0 %v249
    %v271 = vpop.f32.mrf.mxu0
    %v272 = vadd.f32 0.0, %v271
    %273 = vdwg.mxu0
    %v276 = vrot.slane %v67, 1
    %v277 = vrot.slane %v68, 1
    %v278 = vsel %vm82, %v276, %v277
    %v279 = vsel %vm86, %v278, 0
    %v281 = vsel %vm86, %v277, 0
    %283 = vmatpush.msra.mxu0 0.0
    %284 = vmatpush.msra.mxu0 0.0
    %285 = vmatpush.msra.mxu0 0.0
    %286 = vmatpush.msra.mxu0 0.0
    %287 = vmatpush.msra.mxu0 0.0
    %288 = vmatpush.msra.mxu0 0.0
    %289 = vmatpush.msra.mxu0 0.0
    %290 = vmatpush.msra.mxu0 0.0
    %291 = vmatpush.msra.mxu0 0.0
    %292 = vmatpush.msra.mxu0 0.0
    %293 = vmatpush.msra.mxu0 0.0
    %294 = vmatpush.msra.mxu0 0.0
    %295 = vmatpush.msra.mxu0 %v78
    %296 = vmatpush.msra.mxu0 %v77
    %297 = vmatpush.msra.mxu0 %v76
    %298 = vmatpush.msra.mxu0 %v75
    %299 = vmatmul.f32.gmra.mxu0 %v279
    %v300 = vpop.f32.mrf.mxu0
    %v301 = vadd.f32 0.0, %v300
    %302 = vmatmul.f32.gmra.mxu0 %v281
    %v303 = vpop.f32.mrf.mxu0
    %v304 = vadd.f32 0.0, %v303
    %305 = vdwg.mxu0
    %v308 = vrot.slane %v69, 1
    %v309 = vrot.slane %v70, 1
    %v310 = vsel %vm82, %v308, %v309
    %v311 = vsel %vm86, %v310, 0
    %v313 = vsel %vm86, %v309, 0
    %315 = vmatpush.msra.mxu0 0.0
    %316 = vmatpush.msra.mxu0 0.0
    %317 = vmatpush.msra.mxu0 0.0
    %318 = vmatpush.msra.mxu0 0.0
    %319 = vmatpush.msra.mxu0 0.0
    %320 = vmatpush.msra.mxu0 0.0
    %321 = vmatpush.msra.mxu0 0.0
    %322 = vmatpush.msra.mxu0 0.0
    %323 = vmatpush.msra.mxu0 0.0
    %324 = vmatpush.msra.mxu0 0.0
    %325 = vmatpush.msra.mxu0 0.0
    %326 = vmatpush.msra.mxu0 0.0
    %327 = vmatpush.msra.mxu0 %v78
    %328 = vmatpush.msra.mxu0 %v77
    %329 = vmatpush.msra.mxu0 %v76
    %330 = vmatpush.msra.mxu0 %v75
    %331 = vmatmul.f32.gmra.mxu0 %v311
    %v332 = vpop.f32.mrf.mxu0
    %v333 = vadd.f32 0.0, %v332
    %334 = vmatmul.f32.gmra.mxu0 %v313
    %v335 = vpop.f32.mrf.mxu0
    %v336 = vadd.f32 0.0, %v335
    %337 = vdwg.mxu0
    %v338 = vsel %vm86, %v55, 0
    %v340 = vsel %vm86, %v56, 0
    %342 = vmatpush.msra.mxu0 0.0
    %343 = vmatpush.msra.mxu0 0.0
    %344 = vmatpush.msra.mxu0 0.0
    %345 = vmatpush.msra.mxu0 0.0
    %346 = vmatpush.msra.mxu0 0.0
    %347 = vmatpush.msra.mxu0 0.0
    %348 = vmatpush.msra.mxu0 0.0
    %349 = vmatpush.msra.mxu0 0.0
    %350 = vmatpush.msra.mxu0 0.0
    %351 = vmatpush.msra.mxu0 0.0
    %352 = vmatpush.msra.mxu0 0.0
    %353 = vmatpush.msra.mxu0 0.0
    %354 = vmatpush.msra.mxu0 %v74
    %355 = vmatpush.msra.mxu0 %v73
    %356 = vmatpush.msra.mxu0 %v72
    %357 = vmatpush.msra.mxu0 %v71
    %358 = vmatmul.f32.gmra.mxu0 %v338
    %v359 = vpop.f32.mrf.mxu0
    %v360 = vadd.f32 %v109, %v359
    %361 = vmatmul.f32.gmra.mxu0 %v340
    %v362 = vpop.f32.mrf.mxu0
    %v363 = vadd.f32 %v112, %v362
    %364 = vdwg.mxu0
    %v365 = vsel %vm86, %v57, 0
    %v367 = vsel %vm86, %v58, 0
    %369 = vmatpush.msra.mxu0 0.0
    %370 = vmatpush.msra.mxu0 0.0
    %371 = vmatpush.msra.mxu0 0.0
    %372 = vmatpush.msra.mxu0 0.0
    %373 = vmatpush.msra.mxu0 0.0
    %374 = vmatpush.msra.mxu0 0.0
    %375 = vmatpush.msra.mxu0 0.0
    %376 = vmatpush.msra.mxu0 0.0
    %377 = vmatpush.msra.mxu0 0.0
    %378 = vmatpush.msra.mxu0 0.0
    %379 = vmatpush.msra.mxu0 0.0
    %380 = vmatpush.msra.mxu0 0.0
    %381 = vmatpush.msra.mxu0 %v74
    %382 = vmatpush.msra.mxu0 %v73
    %383 = vmatpush.msra.mxu0 %v72
    %384 = vmatpush.msra.mxu0 %v71
    %385 = vmatmul.f32.gmra.mxu0 %v365
    %v386 = vpop.f32.mrf.mxu0
    %v387 = vadd.f32 %v141, %v386
    %388 = vmatmul.f32.gmra.mxu0 %v367
    %v389 = vpop.f32.mrf.mxu0
    %v390 = vadd.f32 %v144, %v389
    %391 = vdwg.mxu0
    %v392 = vsel %vm86, %v59, 0
    %v394 = vsel %vm86, %v60, 0
    %396 = vmatpush.msra.mxu0 0.0
    %397 = vmatpush.msra.mxu0 0.0
    %398 = vmatpush.msra.mxu0 0.0
    %399 = vmatpush.msra.mxu0 0.0
    %400 = vmatpush.msra.mxu0 0.0
    %401 = vmatpush.msra.mxu0 0.0
    %402 = vmatpush.msra.mxu0 0.0
    %403 = vmatpush.msra.mxu0 0.0
    %404 = vmatpush.msra.mxu0 0.0
    %405 = vmatpush.msra.mxu0 0.0
    %406 = vmatpush.msra.mxu0 0.0
    %407 = vmatpush.msra.mxu0 0.0
    %408 = vmatpush.msra.mxu0 %v74
    %409 = vmatpush.msra.mxu0 %v73
    %410 = vmatpush.msra.mxu0 %v72
    %411 = vmatpush.msra.mxu0 %v71
    %412 = vmatmul.f32.gmra.mxu0 %v392
    %v413 = vpop.f32.mrf.mxu0
    %v414 = vadd.f32 %v173, %v413
    %415 = vmatmul.f32.gmra.mxu0 %v394
    %v416 = vpop.f32.mrf.mxu0
    %v417 = vadd.f32 %v176, %v416
    %418 = vdwg.mxu0
    %v419 = vsel %vm86, %v61, 0
    %v421 = vsel %vm86, %v62, 0
    %423 = vmatpush.msra.mxu0 0.0
    %424 = vmatpush.msra.mxu0 0.0
    %425 = vmatpush.msra.mxu0 0.0
    %426 = vmatpush.msra.mxu0 0.0
    %427 = vmatpush.msra.mxu0 0.0
    %428 = vmatpush.msra.mxu0 0.0
    %429 = vmatpush.msra.mxu0 0.0
    %430 = vmatpush.msra.mxu0 0.0
    %431 = vmatpush.msra.mxu0 0.0
    %432 = vmatpush.msra.mxu0 0.0
    %433 = vmatpush.msra.mxu0 0.0
    %434 = vmatpush.msra.mxu0 0.0
    %435 = vmatpush.msra.mxu0 %v74
    %436 = vmatpush.msra.mxu0 %v73
    %437 = vmatpush.msra.mxu0 %v72
    %438 = vmatpush.msra.mxu0 %v71
    %439 = vmatmul.f32.gmra.mxu0 %v419
    %v440 = vpop.f32.mrf.mxu0
    %v441 = vadd.f32 %v205, %v440
    %442 = vmatmul.f32.gmra.mxu0 %v421
    %v443 = vpop.f32.mrf.mxu0
    %v444 = vadd.f32 %v208, %v443
    %445 = vdwg.mxu0
    %v446 = vsel %vm86, %v63, 0
    %v448 = vsel %vm86, %v64, 0
    %450 = vmatpush.msra.mxu0 0.0
    %451 = vmatpush.msra.mxu0 0.0
    %452 = vmatpush.msra.mxu0 0.0
    %453 = vmatpush.msra.mxu0 0.0
    %454 = vmatpush.msra.mxu0 0.0
    %455 = vmatpush.msra.mxu0 0.0
    %456 = vmatpush.msra.mxu0 0.0
    %457 = vmatpush.msra.mxu0 0.0
    %458 = vmatpush.msra.mxu0 0.0
    %459 = vmatpush.msra.mxu0 0.0
    %460 = vmatpush.msra.mxu0 0.0
    %461 = vmatpush.msra.mxu0 0.0
    %462 = vmatpush.msra.mxu0 %v74
    %463 = vmatpush.msra.mxu0 %v73
    %464 = vmatpush.msra.mxu0 %v72
    %465 = vmatpush.msra.mxu0 %v71
    %466 = vmatmul.f32.gmra.mxu0 %v446
    %v467 = vpop.f32.mrf.mxu0
    %v468 = vadd.f32 %v237, %v467
    %469 = vmatmul.f32.gmra.mxu0 %v448
    %v470 = vpop.f32.mrf.mxu0
    %v471 = vadd.f32 %v240, %v470
    %472 = vdwg.mxu0
    %v473 = vsel %vm86, %v65, 0
    %v475 = vsel %vm86, %v66, 0
    %477 = vmatpush.msra.mxu0 0.0
    %478 = vmatpush.msra.mxu0 0.0
    %479 = vmatpush.msra.mxu0 0.0
    %480 = vmatpush.msra.mxu0 0.0
    %481 = vmatpush.msra.mxu0 0.0
    %482 = vmatpush.msra.mxu0 0.0
    %483 = vmatpush.msra.mxu0 0.0
    %484 = vmatpush.msra.mxu0 0.0
    %485 = vmatpush.msra.mxu0 0.0
    %486 = vmatpush.msra.mxu0 0.0
    %487 = vmatpush.msra.mxu0 0.0
    %488 = vmatpush.msra.mxu0 0.0
    %489 = vmatpush.msra.mxu0 %v74
    %490 = vmatpush.msra.mxu0 %v73
    %491 = vmatpush.msra.mxu0 %v72
    %492 = vmatpush.msra.mxu0 %v71
    %493 = vmatmul.f32.gmra.mxu0 %v473
    %v494 = vpop.f32.mrf.mxu0
    %v495 = vadd.f32 %v269, %v494
    %496 = vmatmul.f32.gmra.mxu0 %v475
    %v497 = vpop.f32.mrf.mxu0
    %v498 = vadd.f32 %v272, %v497
    %499 = vdwg.mxu0
    %v500 = vsel %vm86, %v67, 0
    %v502 = vsel %vm86, %v68, 0
    %504 = vmatpush.msra.mxu0 0.0
    %505 = vmatpush.msra.mxu0 0.0
    %506 = vmatpush.msra.mxu0 0.0
    %507 = vmatpush.msra.mxu0 0.0
    %508 = vmatpush.msra.mxu0 0.0
    %509 = vmatpush.msra.mxu0 0.0
    %510 = vmatpush.msra.mxu0 0.0
    %511 = vmatpush.msra.mxu0 0.0
    %512 = vmatpush.msra.mxu0 0.0
    %513 = vmatpush.msra.mxu0 0.0
    %514 = vmatpush.msra.mxu0 0.0
    %515 = vmatpush.msra.mxu0 0.0
    %516 = vmatpush.msra.mxu0 %v74
    %517 = vmatpush.msra.mxu0 %v73
    %518 = vmatpush.msra.mxu0 %v72
    %519 = vmatpush.msra.mxu0 %v71
    %520 = vmatmul.f32.gmra.mxu0 %v500
    %v521 = vpop.f32.mrf.mxu0
    %v522 = vadd.f32 %v301, %v521
    %523 = vmatmul.f32.gmra.mxu0 %v502
    %v524 = vpop.f32.mrf.mxu0
    %v525 = vadd.f32 %v304, %v524
    %526 = vdwg.mxu0
    %v527 = vsel %vm86, %v69, 0
    %v529 = vsel %vm86, %v70, 0
    %531 = vmatpush.msra.mxu0 0.0
    %532 = vmatpush.msra.mxu0 0.0
    %533 = vmatpush.msra.mxu0 0.0
    %534 = vmatpush.msra.mxu0 0.0
    %535 = vmatpush.msra.mxu0 0.0
    %536 = vmatpush.msra.mxu0 0.0
    %537 = vmatpush.msra.mxu0 0.0
    %538 = vmatpush.msra.mxu0 0.0
    %539 = vmatpush.msra.mxu0 0.0
    %540 = vmatpush.msra.mxu0 0.0
    %541 = vmatpush.msra.mxu0 0.0
    %542 = vmatpush.msra.mxu0 0.0
    %543 = vmatpush.msra.mxu0 %v74
    %544 = vmatpush.msra.mxu0 %v73
    %545 = vmatpush.msra.mxu0 %v72
    %546 = vmatpush.msra.mxu0 %v71
    %547 = vmatmul.f32.gmra.mxu0 %v527
    %v548 = vpop.f32.mrf.mxu0
    %v549 = vadd.f32 %v333, %v548
    %550 = vmatmul.f32.gmra.mxu0 %v529
    %v551 = vpop.f32.mrf.mxu0
    %v552 = vadd.f32 %v336, %v551
    %553 = vdwg.mxu0
    %vm554 = vcmask 130048
    %v555 = vsel %vm554, %v360, -inf
    %vm556 = vcmask 129024
    %v557 = vsel %vm556, %v363, -inf
    %v558 = vmax.f32 %v555, %v557
    %v559 = vrot.slane %v558, 4
    %v560 = vmax.f32 %v558, %v559
    %v561 = vrot.slane %v560, 2
    %v562 = vmax.f32 %v560, %v561
    %v563 = vrot.slane %v562, 1
    %v564 = vmax.f32 %v562, %v563
    %v565 = vsel %vm554, %v387, -inf
    %v566 = vsel %vm556, %v390, -inf
    %v567 = vmax.f32 %v565, %v566
    %v568 = vrot.slane %v567, 4
    %v569 = vmax.f32 %v567, %v568
    %v570 = vrot.slane %v569, 2
    %v571 = vmax.f32 %v569, %v570
    %v572 = vrot.slane %v571, 1
    %v573 = vmax.f32 %v571, %v572
    %v574 = vsel %vm554, %v414, -inf
    %v575 = vsel %vm556, %v417, -inf
    %v576 = vmax.f32 %v574, %v575
    %v577 = vrot.slane %v576, 4
    %v578 = vmax.f32 %v576, %v577
    %v579 = vrot.slane %v578, 2
    %v580 = vmax.f32 %v578, %v579
    %v581 = vrot.slane %v580, 1
    %v582 = vmax.f32 %v580, %v581
    %v583 = vsel %vm554, %v441, -inf
    %v584 = vsel %vm556, %v444, -inf
    %v585 = vmax.f32 %v583, %v584
    %v586 = vrot.slane %v585, 4
    %v587 = vmax.f32 %v585, %v586
    %v588 = vrot.slane %v587, 2
    %v589 = vmax.f32 %v587, %v588
    %v590 = vrot.slane %v589, 1
    %v591 = vmax.f32 %v589, %v590
    %v592 = vsel %vm554, %v468, -inf
    %v593 = vsel %vm556, %v471, -inf
    %v594 = vmax.f32 %v592, %v593
    %v595 = vrot.slane %v594, 4
    %v596 = vmax.f32 %v594, %v595
    %v597 = vrot.slane %v596, 2
    %v598 = vmax.f32 %v596, %v597
    %v599 = vrot.slane %v598, 1
    %v600 = vmax.f32 %v598, %v599
    %v601 = vsel %vm554, %v495, -inf
    %v602 = vsel %vm556, %v498, -inf
    %v603 = vmax.f32 %v601, %v602
    %v604 = vrot.slane %v603, 4
    %v605 = vmax.f32 %v603, %v604
    %v606 = vrot.slane %v605, 2
    %v607 = vmax.f32 %v605, %v606
    %v608 = vrot.slane %v607, 1
    %v609 = vmax.f32 %v607, %v608
    %v610 = vsel %vm554, %v522, -inf
    %v611 = vsel %vm556, %v525, -inf
    %v612 = vmax.f32 %v610, %v611
    %v613 = vrot.slane %v612, 4
    %v614 = vmax.f32 %v612, %v613
    %v615 = vrot.slane %v614, 2
    %v616 = vmax.f32 %v614, %v615
    %v617 = vrot.slane %v616, 1
    %v618 = vmax.f32 %v616, %v617
    %v619 = vsel %vm554, %v549, -inf
    %v620 = vsel %vm556, %v552, -inf
    %v621 = vmax.f32 %v619, %v620
    %v622 = vrot.slane %v621, 4
    %v623 = vmax.f32 %v621, %v622
    %v624 = vrot.slane %v623, 2
    %v625 = vmax.f32 %v623, %v624
    %v626 = vrot.slane %v625, 1
    %v627 = vmax.f32 %v625, %v626
    %v629 = vperm.slane %v79, 0
    %v631 = vadd.f32 %v564, %v629
    %v632 = vadd.f32 %v573, %v629
    %v633 = vadd.f32 %v582, %v629
    %v634 = vadd.f32 %v591, %v629
    %v635 = vadd.f32 %v600, %v629
    %v636 = vadd.f32 %v609, %v629
    %v637 = vadd.f32 %v618, %v629
    %v638 = vadd.f32 %v627, %v629
    %v639 = vmax.f32 %v631, 0.0
    %v640 = vmax.f32 %v632, 0.0
    %v641 = vmax.f32 %v633, 0.0
    %v642 = vmax.f32 %v634, 0.0
    %v643 = vmax.f32 %v635, 0.0
    %v644 = vmax.f32 %v636, 0.0
    %v645 = vmax.f32 %v637, 0.0
    %v646 = vmax.f32 %v638, 0.0
    %v647 = vld [vmem:[%s2] sm:$0xff]
    %v648 = vld [vmem:[%s2 + $0x8] sm:$0xff]
    %v649 = vld [vmem:[%s2 + $0x10] sm:$0xff]
    %v650 = vld [vmem:[%s2 + $0x18] sm:$0xff]
    %v651 = vld [vmem:[%s2 + $0x20] sm:$0xff]
    %v652 = vld [vmem:[%s2 + $0x28] sm:$0xff]
    %v653 = vld [vmem:[%s2 + $0x30] sm:$0xff]
    %v654 = vld [vmem:[%s2 + $0x38] sm:$0xff]
    %v655 = vld [vmem:[%s2 + $0x40] sm:$0xff]
    %v656 = vld [vmem:[%s2 + $0x48] sm:$0xff]
    %v657 = vld [vmem:[%s2 + $0x50] sm:$0xff]
    %v658 = vld [vmem:[%s2 + $0x58] sm:$0xff]
    %v659 = vld [vmem:[%s4] sm:$0x1]
    %660 = vmatpush.msra.mxu0 0.0
    %661 = vmatpush.msra.mxu0 0.0
    %662 = vmatpush.msra.mxu0 0.0
    %663 = vmatpush.msra.mxu0 0.0
    %664 = vmatpush.msra.mxu0 0.0
    %665 = vmatpush.msra.mxu0 0.0
    %666 = vmatpush.msra.mxu0 0.0
    %667 = vmatpush.msra.mxu0 0.0
    %668 = vmatpush.msra.mxu0 0.0
    %669 = vmatpush.msra.mxu0 0.0
    %670 = vmatpush.msra.mxu0 0.0
    %671 = vmatpush.msra.mxu0 0.0
    %672 = vmatpush.msra.mxu0 %v654
    %673 = vmatpush.msra.mxu0 %v653
    %674 = vmatpush.msra.mxu0 %v652
    %675 = vmatpush.msra.mxu0 %v651
    %676 = vmatmul.f32.gmra.mxu0 %v87
    %v677 = vpop.f32.mrf.mxu0
    %v678 = vadd.f32 0.0, %v677
    %679 = vmatmul.f32.gmra.mxu0 %v89
    %v680 = vpop.f32.mrf.mxu0
    %v681 = vadd.f32 0.0, %v680
    %682 = vdwg.mxu0
    %683 = vmatpush.msra.mxu0 0.0
    %684 = vmatpush.msra.mxu0 0.0
    %685 = vmatpush.msra.mxu0 0.0
    %686 = vmatpush.msra.mxu0 0.0
    %687 = vmatpush.msra.mxu0 0.0
    %688 = vmatpush.msra.mxu0 0.0
    %689 = vmatpush.msra.mxu0 0.0
    %690 = vmatpush.msra.mxu0 0.0
    %691 = vmatpush.msra.mxu0 0.0
    %692 = vmatpush.msra.mxu0 0.0
    %693 = vmatpush.msra.mxu0 0.0
    %694 = vmatpush.msra.mxu0 0.0
    %695 = vmatpush.msra.mxu0 %v654
    %696 = vmatpush.msra.mxu0 %v653
    %697 = vmatpush.msra.mxu0 %v652
    %698 = vmatpush.msra.mxu0 %v651
    %699 = vmatmul.f32.gmra.mxu0 %v119
    %v700 = vpop.f32.mrf.mxu0
    %v701 = vadd.f32 0.0, %v700
    %702 = vmatmul.f32.gmra.mxu0 %v121
    %v703 = vpop.f32.mrf.mxu0
    %v704 = vadd.f32 0.0, %v703
    %705 = vdwg.mxu0
    %706 = vmatpush.msra.mxu0 0.0
    %707 = vmatpush.msra.mxu0 0.0
    %708 = vmatpush.msra.mxu0 0.0
    %709 = vmatpush.msra.mxu0 0.0
    %710 = vmatpush.msra.mxu0 0.0
    %711 = vmatpush.msra.mxu0 0.0
    %712 = vmatpush.msra.mxu0 0.0
    %713 = vmatpush.msra.mxu0 0.0
    %714 = vmatpush.msra.mxu0 0.0
    %715 = vmatpush.msra.mxu0 0.0
    %716 = vmatpush.msra.mxu0 0.0
    %717 = vmatpush.msra.mxu0 0.0
    %718 = vmatpush.msra.mxu0 %v654
    %719 = vmatpush.msra.mxu0 %v653
    %720 = vmatpush.msra.mxu0 %v652
    %721 = vmatpush.msra.mxu0 %v651
    %722 = vmatmul.f32.gmra.mxu0 %v151
    %v723 = vpop.f32.mrf.mxu0
    %v724 = vadd.f32 0.0, %v723
    %725 = vmatmul.f32.gmra.mxu0 %v153
    %v726 = vpop.f32.mrf.mxu0
    %v727 = vadd.f32 0.0, %v726
    %728 = vdwg.mxu0
    %729 = vmatpush.msra.mxu0 0.0
    %730 = vmatpush.msra.mxu0 0.0
    %731 = vmatpush.msra.mxu0 0.0
    %732 = vmatpush.msra.mxu0 0.0
    %733 = vmatpush.msra.mxu0 0.0
    %734 = vmatpush.msra.mxu0 0.0
    %735 = vmatpush.msra.mxu0 0.0
    %736 = vmatpush.msra.mxu0 0.0
    %737 = vmatpush.msra.mxu0 0.0
    %738 = vmatpush.msra.mxu0 0.0
    %739 = vmatpush.msra.mxu0 0.0
    %740 = vmatpush.msra.mxu0 0.0
    %741 = vmatpush.msra.mxu0 %v654
    %742 = vmatpush.msra.mxu0 %v653
    %743 = vmatpush.msra.mxu0 %v652
    %744 = vmatpush.msra.mxu0 %v651
    %745 = vmatmul.f32.gmra.mxu0 %v183
    %v746 = vpop.f32.mrf.mxu0
    %v747 = vadd.f32 0.0, %v746
    %748 = vmatmul.f32.gmra.mxu0 %v185
    %v749 = vpop.f32.mrf.mxu0
    %v750 = vadd.f32 0.0, %v749
    %751 = vdwg.mxu0
    %752 = vmatpush.msra.mxu0 0.0
    %753 = vmatpush.msra.mxu0 0.0
    %754 = vmatpush.msra.mxu0 0.0
    %755 = vmatpush.msra.mxu0 0.0
    %756 = vmatpush.msra.mxu0 0.0
    %757 = vmatpush.msra.mxu0 0.0
    %758 = vmatpush.msra.mxu0 0.0
    %759 = vmatpush.msra.mxu0 0.0
    %760 = vmatpush.msra.mxu0 0.0
    %761 = vmatpush.msra.mxu0 0.0
    %762 = vmatpush.msra.mxu0 0.0
    %763 = vmatpush.msra.mxu0 0.0
    %764 = vmatpush.msra.mxu0 %v654
    %765 = vmatpush.msra.mxu0 %v653
    %766 = vmatpush.msra.mxu0 %v652
    %767 = vmatpush.msra.mxu0 %v651
    %768 = vmatmul.f32.gmra.mxu0 %v215
    %v769 = vpop.f32.mrf.mxu0
    %v770 = vadd.f32 0.0, %v769
    %771 = vmatmul.f32.gmra.mxu0 %v217
    %v772 = vpop.f32.mrf.mxu0
    %v773 = vadd.f32 0.0, %v772
    %774 = vdwg.mxu0
    %775 = vmatpush.msra.mxu0 0.0
    %776 = vmatpush.msra.mxu0 0.0
    %777 = vmatpush.msra.mxu0 0.0
    %778 = vmatpush.msra.mxu0 0.0
    %779 = vmatpush.msra.mxu0 0.0
    %780 = vmatpush.msra.mxu0 0.0
    %781 = vmatpush.msra.mxu0 0.0
    %782 = vmatpush.msra.mxu0 0.0
    %783 = vmatpush.msra.mxu0 0.0
    %784 = vmatpush.msra.mxu0 0.0
    %785 = vmatpush.msra.mxu0 0.0
    %786 = vmatpush.msra.mxu0 0.0
    %787 = vmatpush.msra.mxu0 %v654
    %788 = vmatpush.msra.mxu0 %v653
    %789 = vmatpush.msra.mxu0 %v652
    %790 = vmatpush.msra.mxu0 %v651
    %791 = vmatmul.f32.gmra.mxu0 %v247
    %v792 = vpop.f32.mrf.mxu0
    %v793 = vadd.f32 0.0, %v792
    %794 = vmatmul.f32.gmra.mxu0 %v249
    %v795 = vpop.f32.mrf.mxu0
    %v796 = vadd.f32 0.0, %v795
    %797 = vdwg.mxu0
    %798 = vmatpush.msra.mxu0 0.0
    %799 = vmatpush.msra.mxu0 0.0
    %800 = vmatpush.msra.mxu0 0.0
    %801 = vmatpush.msra.mxu0 0.0
    %802 = vmatpush.msra.mxu0 0.0
    %803 = vmatpush.msra.mxu0 0.0
    %804 = vmatpush.msra.mxu0 0.0
    %805 = vmatpush.msra.mxu0 0.0
    %806 = vmatpush.msra.mxu0 0.0
    %807 = vmatpush.msra.mxu0 0.0
    %808 = vmatpush.msra.mxu0 0.0
    %809 = vmatpush.msra.mxu0 0.0
    %810 = vmatpush.msra.mxu0 %v654
    %811 = vmatpush.msra.mxu0 %v653
    %812 = vmatpush.msra.mxu0 %v652
    %813 = vmatpush.msra.mxu0 %v651
    %814 = vmatmul.f32.gmra.mxu0 %v279
    %v815 = vpop.f32.mrf.mxu0
    %v816 = vadd.f32 0.0, %v815
    %817 = vmatmul.f32.gmra.mxu0 %v281
    %v818 = vpop.f32.mrf.mxu0
    %v819 = vadd.f32 0.0, %v818
    %820 = vdwg.mxu0
    %821 = vmatpush.msra.mxu0 0.0
    %822 = vmatpush.msra.mxu0 0.0
    %823 = vmatpush.msra.mxu0 0.0
    %824 = vmatpush.msra.mxu0 0.0
    %825 = vmatpush.msra.mxu0 0.0
    %826 = vmatpush.msra.mxu0 0.0
    %827 = vmatpush.msra.mxu0 0.0
    %828 = vmatpush.msra.mxu0 0.0
    %829 = vmatpush.msra.mxu0 0.0
    %830 = vmatpush.msra.mxu0 0.0
    %831 = vmatpush.msra.mxu0 0.0
    %832 = vmatpush.msra.mxu0 0.0
    %833 = vmatpush.msra.mxu0 %v654
    %834 = vmatpush.msra.mxu0 %v653
    %835 = vmatpush.msra.mxu0 %v652
    %836 = vmatpush.msra.mxu0 %v651
    %837 = vmatmul.f32.gmra.mxu0 %v311
    %v838 = vpop.f32.mrf.mxu0
    %v839 = vadd.f32 0.0, %v838
    %840 = vmatmul.f32.gmra.mxu0 %v313
    %v841 = vpop.f32.mrf.mxu0
    %v842 = vadd.f32 0.0, %v841
    %843 = vdwg.mxu0
    %844 = vmatpush.msra.mxu0 0.0
    %845 = vmatpush.msra.mxu0 0.0
    %846 = vmatpush.msra.mxu0 0.0
    %847 = vmatpush.msra.mxu0 0.0
    %848 = vmatpush.msra.mxu0 0.0
    %849 = vmatpush.msra.mxu0 0.0
    %850 = vmatpush.msra.mxu0 0.0
    %851 = vmatpush.msra.mxu0 0.0
    %852 = vmatpush.msra.mxu0 0.0
    %853 = vmatpush.msra.mxu0 0.0
    %854 = vmatpush.msra.mxu0 0.0
    %855 = vmatpush.msra.mxu0 0.0
    %856 = vmatpush.msra.mxu0 %v650
    %857 = vmatpush.msra.mxu0 %v649
    %858 = vmatpush.msra.mxu0 %v648
    %859 = vmatpush.msra.mxu0 %v647
    %860 = vmatmul.f32.gmra.mxu0 %v338
    %v861 = vpop.f32.mrf.mxu0
    %v862 = vadd.f32 %v678, %v861
    %863 = vmatmul.f32.gmra.mxu0 %v340
    %v864 = vpop.f32.mrf.mxu0
    %v865 = vadd.f32 %v681, %v864
    %866 = vdwg.mxu0
    %867 = vmatpush.msra.mxu0 0.0
    %868 = vmatpush.msra.mxu0 0.0
    %869 = vmatpush.msra.mxu0 0.0
    %870 = vmatpush.msra.mxu0 0.0
    %871 = vmatpush.msra.mxu0 0.0
    %872 = vmatpush.msra.mxu0 0.0
    %873 = vmatpush.msra.mxu0 0.0
    %874 = vmatpush.msra.mxu0 0.0
    %875 = vmatpush.msra.mxu0 0.0
    %876 = vmatpush.msra.mxu0 0.0
    %877 = vmatpush.msra.mxu0 0.0
    %878 = vmatpush.msra.mxu0 0.0
    %879 = vmatpush.msra.mxu0 %v650
    %880 = vmatpush.msra.mxu0 %v649
    %881 = vmatpush.msra.mxu0 %v648
    %882 = vmatpush.msra.mxu0 %v647
    %883 = vmatmul.f32.gmra.mxu0 %v365
    %v884 = vpop.f32.mrf.mxu0
    %v885 = vadd.f32 %v701, %v884
    %886 = vmatmul.f32.gmra.mxu0 %v367
    %v887 = vpop.f32.mrf.mxu0
    %v888 = vadd.f32 %v704, %v887
    %889 = vdwg.mxu0
    %890 = vmatpush.msra.mxu0 0.0
    %891 = vmatpush.msra.mxu0 0.0
    %892 = vmatpush.msra.mxu0 0.0
    %893 = vmatpush.msra.mxu0 0.0
    %894 = vmatpush.msra.mxu0 0.0
    %895 = vmatpush.msra.mxu0 0.0
    %896 = vmatpush.msra.mxu0 0.0
    %897 = vmatpush.msra.mxu0 0.0
    %898 = vmatpush.msra.mxu0 0.0
    %899 = vmatpush.msra.mxu0 0.0
    %900 = vmatpush.msra.mxu0 0.0
    %901 = vmatpush.msra.mxu0 0.0
    %902 = vmatpush.msra.mxu0 %v650
    %903 = vmatpush.msra.mxu0 %v649
    %904 = vmatpush.msra.mxu0 %v648
    %905 = vmatpush.msra.mxu0 %v647
    %906 = vmatmul.f32.gmra.mxu0 %v392
    %v907 = vpop.f32.mrf.mxu0
    %v908 = vadd.f32 %v724, %v907
    %909 = vmatmul.f32.gmra.mxu0 %v394
    %v910 = vpop.f32.mrf.mxu0
    %v911 = vadd.f32 %v727, %v910
    %912 = vdwg.mxu0
    %913 = vmatpush.msra.mxu0 0.0
    %914 = vmatpush.msra.mxu0 0.0
    %915 = vmatpush.msra.mxu0 0.0
    %916 = vmatpush.msra.mxu0 0.0
    %917 = vmatpush.msra.mxu0 0.0
    %918 = vmatpush.msra.mxu0 0.0
    %919 = vmatpush.msra.mxu0 0.0
    %920 = vmatpush.msra.mxu0 0.0
    %921 = vmatpush.msra.mxu0 0.0
    %922 = vmatpush.msra.mxu0 0.0
    %923 = vmatpush.msra.mxu0 0.0
    %924 = vmatpush.msra.mxu0 0.0
    %925 = vmatpush.msra.mxu0 %v650
    %926 = vmatpush.msra.mxu0 %v649
    %927 = vmatpush.msra.mxu0 %v648
    %928 = vmatpush.msra.mxu0 %v647
    %929 = vmatmul.f32.gmra.mxu0 %v419
    %v930 = vpop.f32.mrf.mxu0
    %v931 = vadd.f32 %v747, %v930
    %932 = vmatmul.f32.gmra.mxu0 %v421
    %v933 = vpop.f32.mrf.mxu0
    %v934 = vadd.f32 %v750, %v933
    %935 = vdwg.mxu0
    %936 = vmatpush.msra.mxu0 0.0
    %937 = vmatpush.msra.mxu0 0.0
    %938 = vmatpush.msra.mxu0 0.0
    %939 = vmatpush.msra.mxu0 0.0
    %940 = vmatpush.msra.mxu0 0.0
    %941 = vmatpush.msra.mxu0 0.0
    %942 = vmatpush.msra.mxu0 0.0
    %943 = vmatpush.msra.mxu0 0.0
    %944 = vmatpush.msra.mxu0 0.0
    %945 = vmatpush.msra.mxu0 0.0
    %946 = vmatpush.msra.mxu0 0.0
    %947 = vmatpush.msra.mxu0 0.0
    %948 = vmatpush.msra.mxu0 %v650
    %949 = vmatpush.msra.mxu0 %v649
    %950 = vmatpush.msra.mxu0 %v648
    %951 = vmatpush.msra.mxu0 %v647
    %952 = vmatmul.f32.gmra.mxu0 %v446
    %v953 = vpop.f32.mrf.mxu0
    %v954 = vadd.f32 %v770, %v953
    %955 = vmatmul.f32.gmra.mxu0 %v448
    %v956 = vpop.f32.mrf.mxu0
    %v957 = vadd.f32 %v773, %v956
    %958 = vdwg.mxu0
    %959 = vmatpush.msra.mxu0 0.0
    %960 = vmatpush.msra.mxu0 0.0
    %961 = vmatpush.msra.mxu0 0.0
    %962 = vmatpush.msra.mxu0 0.0
    %963 = vmatpush.msra.mxu0 0.0
    %964 = vmatpush.msra.mxu0 0.0
    %965 = vmatpush.msra.mxu0 0.0
    %966 = vmatpush.msra.mxu0 0.0
    %967 = vmatpush.msra.mxu0 0.0
    %968 = vmatpush.msra.mxu0 0.0
    %969 = vmatpush.msra.mxu0 0.0
    %970 = vmatpush.msra.mxu0 0.0
    %971 = vmatpush.msra.mxu0 %v650
    %972 = vmatpush.msra.mxu0 %v649
    %973 = vmatpush.msra.mxu0 %v648
    %974 = vmatpush.msra.mxu0 %v647
    %975 = vmatmul.f32.gmra.mxu0 %v473
    %v976 = vpop.f32.mrf.mxu0
    %v977 = vadd.f32 %v793, %v976
    %978 = vmatmul.f32.gmra.mxu0 %v475
    %v979 = vpop.f32.mrf.mxu0
    %v980 = vadd.f32 %v796, %v979
    %981 = vdwg.mxu0
    %982 = vmatpush.msra.mxu0 0.0
    %983 = vmatpush.msra.mxu0 0.0
    %984 = vmatpush.msra.mxu0 0.0
    %985 = vmatpush.msra.mxu0 0.0
    %986 = vmatpush.msra.mxu0 0.0
    %987 = vmatpush.msra.mxu0 0.0
    %988 = vmatpush.msra.mxu0 0.0
    %989 = vmatpush.msra.mxu0 0.0
    %990 = vmatpush.msra.mxu0 0.0
    %991 = vmatpush.msra.mxu0 0.0
    %992 = vmatpush.msra.mxu0 0.0
    %993 = vmatpush.msra.mxu0 0.0
    %994 = vmatpush.msra.mxu0 %v650
    %995 = vmatpush.msra.mxu0 %v649
    %996 = vmatpush.msra.mxu0 %v648
    %997 = vmatpush.msra.mxu0 %v647
    %998 = vmatmul.f32.gmra.mxu0 %v500
    %v999 = vpop.f32.mrf.mxu0
    %v1000 = vadd.f32 %v816, %v999
    %1001 = vmatmul.f32.gmra.mxu0 %v502
    %v1002 = vpop.f32.mrf.mxu0
    %v1003 = vadd.f32 %v819, %v1002
    %1004 = vdwg.mxu0
    %1005 = vmatpush.msra.mxu0 0.0
    %1006 = vmatpush.msra.mxu0 0.0
    %1007 = vmatpush.msra.mxu0 0.0
    %1008 = vmatpush.msra.mxu0 0.0
    %1009 = vmatpush.msra.mxu0 0.0
    %1010 = vmatpush.msra.mxu0 0.0
    %1011 = vmatpush.msra.mxu0 0.0
    %1012 = vmatpush.msra.mxu0 0.0
    %1013 = vmatpush.msra.mxu0 0.0
    %1014 = vmatpush.msra.mxu0 0.0
    %1015 = vmatpush.msra.mxu0 0.0
    %1016 = vmatpush.msra.mxu0 0.0
    %1017 = vmatpush.msra.mxu0 %v650
    %1018 = vmatpush.msra.mxu0 %v649
    %1019 = vmatpush.msra.mxu0 %v648
    %1020 = vmatpush.msra.mxu0 %v647
    %1021 = vmatmul.f32.gmra.mxu0 %v527
    %v1022 = vpop.f32.mrf.mxu0
    %v1023 = vadd.f32 %v839, %v1022
    %1024 = vmatmul.f32.gmra.mxu0 %v529
    %v1025 = vpop.f32.mrf.mxu0
    %v1026 = vadd.f32 %v842, %v1025
    %1027 = vdwg.mxu0
    %vm1028 = vcmask 1045504
    %v1029 = vrot.slane %v55, 2
    %v1030 = vrot.slane %v56, 2
    %v1031 = vsel %vm1028, %v1029, %v1030
    %v1032 = vsel %vm86, %v1031, 0
    %v1034 = vsel %vm86, %v1030, 0
    %1036 = vmatpush.msra.mxu0 0.0
    %1037 = vmatpush.msra.mxu0 0.0
    %1038 = vmatpush.msra.mxu0 0.0
    %1039 = vmatpush.msra.mxu0 0.0
    %1040 = vmatpush.msra.mxu0 0.0
    %1041 = vmatpush.msra.mxu0 0.0
    %1042 = vmatpush.msra.mxu0 0.0
    %1043 = vmatpush.msra.mxu0 0.0
    %1044 = vmatpush.msra.mxu0 0.0
    %1045 = vmatpush.msra.mxu0 0.0
    %1046 = vmatpush.msra.mxu0 0.0
    %1047 = vmatpush.msra.mxu0 0.0
    %1048 = vmatpush.msra.mxu0 %v658
    %1049 = vmatpush.msra.mxu0 %v657
    %1050 = vmatpush.msra.mxu0 %v656
    %1051 = vmatpush.msra.mxu0 %v655
    %1052 = vmatmul.f32.gmra.mxu0 %v1032
    %v1053 = vpop.f32.mrf.mxu0
    %v1054 = vadd.f32 0.0, %v1053
    %1055 = vmatmul.f32.gmra.mxu0 %v1034
    %v1056 = vpop.f32.mrf.mxu0
    %v1057 = vadd.f32 0.0, %v1056
    %1058 = vdwg.mxu0
    %v1059 = vrot.slane %v57, 2
    %v1060 = vrot.slane %v58, 2
    %v1061 = vsel %vm1028, %v1059, %v1060
    %v1062 = vsel %vm86, %v1061, 0
    %v1064 = vsel %vm86, %v1060, 0
    %1066 = vmatpush.msra.mxu0 0.0
    %1067 = vmatpush.msra.mxu0 0.0
    %1068 = vmatpush.msra.mxu0 0.0
    %1069 = vmatpush.msra.mxu0 0.0
    %1070 = vmatpush.msra.mxu0 0.0
    %1071 = vmatpush.msra.mxu0 0.0
    %1072 = vmatpush.msra.mxu0 0.0
    %1073 = vmatpush.msra.mxu0 0.0
    %1074 = vmatpush.msra.mxu0 0.0
    %1075 = vmatpush.msra.mxu0 0.0
    %1076 = vmatpush.msra.mxu0 0.0
    %1077 = vmatpush.msra.mxu0 0.0
    %1078 = vmatpush.msra.mxu0 %v658
    %1079 = vmatpush.msra.mxu0 %v657
    %1080 = vmatpush.msra.mxu0 %v656
    %1081 = vmatpush.msra.mxu0 %v655
    %1082 = vmatmul.f32.gmra.mxu0 %v1062
    %v1083 = vpop.f32.mrf.mxu0
    %v1084 = vadd.f32 0.0, %v1083
    %1085 = vmatmul.f32.gmra.mxu0 %v1064
    %v1086 = vpop.f32.mrf.mxu0
    %v1087 = vadd.f32 0.0, %v1086
    %1088 = vdwg.mxu0
    %v1089 = vrot.slane %v59, 2
    %v1090 = vrot.slane %v60, 2
    %v1091 = vsel %vm1028, %v1089, %v1090
    %v1092 = vsel %vm86, %v1091, 0
    %v1094 = vsel %vm86, %v1090, 0
    %1096 = vmatpush.msra.mxu0 0.0
    %1097 = vmatpush.msra.mxu0 0.0
    %1098 = vmatpush.msra.mxu0 0.0
    %1099 = vmatpush.msra.mxu0 0.0
    %1100 = vmatpush.msra.mxu0 0.0
    %1101 = vmatpush.msra.mxu0 0.0
    %1102 = vmatpush.msra.mxu0 0.0
    %1103 = vmatpush.msra.mxu0 0.0
    %1104 = vmatpush.msra.mxu0 0.0
    %1105 = vmatpush.msra.mxu0 0.0
    %1106 = vmatpush.msra.mxu0 0.0
    %1107 = vmatpush.msra.mxu0 0.0
    %1108 = vmatpush.msra.mxu0 %v658
    %1109 = vmatpush.msra.mxu0 %v657
    %1110 = vmatpush.msra.mxu0 %v656
    %1111 = vmatpush.msra.mxu0 %v655
    %1112 = vmatmul.f32.gmra.mxu0 %v1092
    %v1113 = vpop.f32.mrf.mxu0
    %v1114 = vadd.f32 0.0, %v1113
    %1115 = vmatmul.f32.gmra.mxu0 %v1094
    %v1116 = vpop.f32.mrf.mxu0
    %v1117 = vadd.f32 0.0, %v1116
    %1118 = vdwg.mxu0
    %v1119 = vrot.slane %v61, 2
    %v1120 = vrot.slane %v62, 2
    %v1121 = vsel %vm1028, %v1119, %v1120
    %v1122 = vsel %vm86, %v1121, 0
    %v1124 = vsel %vm86, %v1120, 0
    %1126 = vmatpush.msra.mxu0 0.0
    %1127 = vmatpush.msra.mxu0 0.0
    %1128 = vmatpush.msra.mxu0 0.0
    %1129 = vmatpush.msra.mxu0 0.0
    %1130 = vmatpush.msra.mxu0 0.0
    %1131 = vmatpush.msra.mxu0 0.0
    %1132 = vmatpush.msra.mxu0 0.0
    %1133 = vmatpush.msra.mxu0 0.0
    %1134 = vmatpush.msra.mxu0 0.0
    %1135 = vmatpush.msra.mxu0 0.0
    %1136 = vmatpush.msra.mxu0 0.0
    %1137 = vmatpush.msra.mxu0 0.0
    %1138 = vmatpush.msra.mxu0 %v658
    %1139 = vmatpush.msra.mxu0 %v657
    %1140 = vmatpush.msra.mxu0 %v656
    %1141 = vmatpush.msra.mxu0 %v655
    %1142 = vmatmul.f32.gmra.mxu0 %v1122
    %v1143 = vpop.f32.mrf.mxu0
    %v1144 = vadd.f32 0.0, %v1143
    %1145 = vmatmul.f32.gmra.mxu0 %v1124
    %v1146 = vpop.f32.mrf.mxu0
    %v1147 = vadd.f32 0.0, %v1146
    %1148 = vdwg.mxu0
    %v1149 = vrot.slane %v63, 2
    %v1150 = vrot.slane %v64, 2
    %v1151 = vsel %vm1028, %v1149, %v1150
    %v1152 = vsel %vm86, %v1151, 0
    %v1154 = vsel %vm86, %v1150, 0
    %1156 = vmatpush.msra.mxu0 0.0
    %1157 = vmatpush.msra.mxu0 0.0
    %1158 = vmatpush.msra.mxu0 0.0
    %1159 = vmatpush.msra.mxu0 0.0
    %1160 = vmatpush.msra.mxu0 0.0
    %1161 = vmatpush.msra.mxu0 0.0
    %1162 = vmatpush.msra.mxu0 0.0
    %1163 = vmatpush.msra.mxu0 0.0
    %1164 = vmatpush.msra.mxu0 0.0
    %1165 = vmatpush.msra.mxu0 0.0
    %1166 = vmatpush.msra.mxu0 0.0
    %1167 = vmatpush.msra.mxu0 0.0
    %1168 = vmatpush.msra.mxu0 %v658
    %1169 = vmatpush.msra.mxu0 %v657
    %1170 = vmatpush.msra.mxu0 %v656
    %1171 = vmatpush.msra.mxu0 %v655
    %1172 = vmatmul.f32.gmra.mxu0 %v1152
    %v1173 = vpop.f32.mrf.mxu0
    %v1174 = vadd.f32 0.0, %v1173
    %1175 = vmatmul.f32.gmra.mxu0 %v1154
    %v1176 = vpop.f32.mrf.mxu0
    %v1177 = vadd.f32 0.0, %v1176
    %1178 = vdwg.mxu0
    %v1179 = vrot.slane %v65, 2
    %v1180 = vrot.slane %v66, 2
    %v1181 = vsel %vm1028, %v1179, %v1180
    %v1182 = vsel %vm86, %v1181, 0
    %v1184 = vsel %vm86, %v1180, 0
    %1186 = vmatpush.msra.mxu0 0.0
    %1187 = vmatpush.msra.mxu0 0.0
    %1188 = vmatpush.msra.mxu0 0.0
    %1189 = vmatpush.msra.mxu0 0.0
    %1190 = vmatpush.msra.mxu0 0.0
    %1191 = vmatpush.msra.mxu0 0.0
    %1192 = vmatpush.msra.mxu0 0.0
    %1193 = vmatpush.msra.mxu0 0.0
    %1194 = vmatpush.msra.mxu0 0.0
    %1195 = vmatpush.msra.mxu0 0.0
    %1196 = vmatpush.msra.mxu0 0.0
    %1197 = vmatpush.msra.mxu0 0.0
    %1198 = vmatpush.msra.mxu0 %v658
    %1199 = vmatpush.msra.mxu0 %v657
    %1200 = vmatpush.msra.mxu0 %v656
    %1201 = vmatpush.msra.mxu0 %v655
    %1202 = vmatmul.f32.gmra.mxu0 %v1182
    %v1203 = vpop.f32.mrf.mxu0
    %v1204 = vadd.f32 0.0, %v1203
    %1205 = vmatmul.f32.gmra.mxu0 %v1184
    %v1206 = vpop.f32.mrf.mxu0
    %v1207 = vadd.f32 0.0, %v1206
    %1208 = vdwg.mxu0
    %v1209 = vrot.slane %v67, 2
    %v1210 = vrot.slane %v68, 2
    %v1211 = vsel %vm1028, %v1209, %v1210
    %v1212 = vsel %vm86, %v1211, 0
    %v1214 = vsel %vm86, %v1210, 0
    %1216 = vmatpush.msra.mxu0 0.0
    %1217 = vmatpush.msra.mxu0 0.0
    %1218 = vmatpush.msra.mxu0 0.0
    %1219 = vmatpush.msra.mxu0 0.0
    %1220 = vmatpush.msra.mxu0 0.0
    %1221 = vmatpush.msra.mxu0 0.0
    %1222 = vmatpush.msra.mxu0 0.0
    %1223 = vmatpush.msra.mxu0 0.0
    %1224 = vmatpush.msra.mxu0 0.0
    %1225 = vmatpush.msra.mxu0 0.0
    %1226 = vmatpush.msra.mxu0 0.0
    %1227 = vmatpush.msra.mxu0 0.0
    %1228 = vmatpush.msra.mxu0 %v658
    %1229 = vmatpush.msra.mxu0 %v657
    %1230 = vmatpush.msra.mxu0 %v656
    %1231 = vmatpush.msra.mxu0 %v655
    %1232 = vmatmul.f32.gmra.mxu0 %v1212
    %v1233 = vpop.f32.mrf.mxu0
    %v1234 = vadd.f32 0.0, %v1233
    %1235 = vmatmul.f32.gmra.mxu0 %v1214
    %v1236 = vpop.f32.mrf.mxu0
    %v1237 = vadd.f32 0.0, %v1236
    %1238 = vdwg.mxu0
    %v1239 = vrot.slane %v69, 2
    %v1240 = vrot.slane %v70, 2
    %v1241 = vsel %vm1028, %v1239, %v1240
    %v1242 = vsel %vm86, %v1241, 0
    %v1244 = vsel %vm86, %v1240, 0
    %1246 = vmatpush.msra.mxu0 0.0
    %1247 = vmatpush.msra.mxu0 0.0
    %1248 = vmatpush.msra.mxu0 0.0
    %1249 = vmatpush.msra.mxu0 0.0
    %1250 = vmatpush.msra.mxu0 0.0
    %1251 = vmatpush.msra.mxu0 0.0
    %1252 = vmatpush.msra.mxu0 0.0
    %1253 = vmatpush.msra.mxu0 0.0
    %1254 = vmatpush.msra.mxu0 0.0
    %1255 = vmatpush.msra.mxu0 0.0
    %1256 = vmatpush.msra.mxu0 0.0
    %1257 = vmatpush.msra.mxu0 0.0
    %1258 = vmatpush.msra.mxu0 %v658
    %1259 = vmatpush.msra.mxu0 %v657
    %1260 = vmatpush.msra.mxu0 %v656
    %1261 = vmatpush.msra.mxu0 %v655
    %1262 = vmatmul.f32.gmra.mxu0 %v1242
    %v1263 = vpop.f32.mrf.mxu0
    %v1264 = vadd.f32 0.0, %v1263
    %1265 = vmatmul.f32.gmra.mxu0 %v1244
    %v1266 = vpop.f32.mrf.mxu0
    %v1267 = vadd.f32 0.0, %v1266
    %1268 = vdwg.mxu0
    %v1269 = vadd.f32 %v862, %v1054
    %v1270 = vadd.f32 %v865, %v1057
    %v1271 = vadd.f32 %v885, %v1084
    %v1272 = vadd.f32 %v888, %v1087
    %v1273 = vadd.f32 %v908, %v1114
    %v1274 = vadd.f32 %v911, %v1117
    %v1275 = vadd.f32 %v931, %v1144
    %v1276 = vadd.f32 %v934, %v1147
    %v1277 = vadd.f32 %v954, %v1174
    %v1278 = vadd.f32 %v957, %v1177
    %v1279 = vadd.f32 %v977, %v1204
    %v1280 = vadd.f32 %v980, %v1207
    %v1281 = vadd.f32 %v1000, %v1234
    %v1282 = vadd.f32 %v1003, %v1237
    %v1283 = vadd.f32 %v1023, %v1264
    %v1284 = vadd.f32 %v1026, %v1267
    %v1285 = vsel %vm554, %v1269, -inf
    %vm1286 = vcmask 128000
    %v1287 = vsel %vm1286, %v1270, -inf
    %v1288 = vmax.f32 %v1285, %v1287
    %v1289 = vrot.slane %v1288, 4
    %v1290 = vmax.f32 %v1288, %v1289
    %v1291 = vrot.slane %v1290, 2
    %v1292 = vmax.f32 %v1290, %v1291
    %v1293 = vrot.slane %v1292, 1
    %v1294 = vmax.f32 %v1292, %v1293
    %v1295 = vsel %vm554, %v1271, -inf
    %v1296 = vsel %vm1286, %v1272, -inf
    %v1297 = vmax.f32 %v1295, %v1296
    %v1298 = vrot.slane %v1297, 4
    %v1299 = vmax.f32 %v1297, %v1298
    %v1300 = vrot.slane %v1299, 2
    %v1301 = vmax.f32 %v1299, %v1300
    %v1302 = vrot.slane %v1301, 1
    %v1303 = vmax.f32 %v1301, %v1302
    %v1304 = vsel %vm554, %v1273, -inf
    %v1305 = vsel %vm1286, %v1274, -inf
    %v1306 = vmax.f32 %v1304, %v1305
    %v1307 = vrot.slane %v1306, 4
    %v1308 = vmax.f32 %v1306, %v1307
    %v1309 = vrot.slane %v1308, 2
    %v1310 = vmax.f32 %v1308, %v1309
    %v1311 = vrot.slane %v1310, 1
    %v1312 = vmax.f32 %v1310, %v1311
    %v1313 = vsel %vm554, %v1275, -inf
    %v1314 = vsel %vm1286, %v1276, -inf
    %v1315 = vmax.f32 %v1313, %v1314
    %v1316 = vrot.slane %v1315, 4
    %v1317 = vmax.f32 %v1315, %v1316
    %v1318 = vrot.slane %v1317, 2
    %v1319 = vmax.f32 %v1317, %v1318
    %v1320 = vrot.slane %v1319, 1
    %v1321 = vmax.f32 %v1319, %v1320
    %v1322 = vsel %vm554, %v1277, -inf
    %v1323 = vsel %vm1286, %v1278, -inf
    %v1324 = vmax.f32 %v1322, %v1323
    %v1325 = vrot.slane %v1324, 4
    %v1326 = vmax.f32 %v1324, %v1325
    %v1327 = vrot.slane %v1326, 2
    %v1328 = vmax.f32 %v1326, %v1327
    %v1329 = vrot.slane %v1328, 1
    %v1330 = vmax.f32 %v1328, %v1329
    %v1331 = vsel %vm554, %v1279, -inf
    %v1332 = vsel %vm1286, %v1280, -inf
    %v1333 = vmax.f32 %v1331, %v1332
    %v1334 = vrot.slane %v1333, 4
    %v1335 = vmax.f32 %v1333, %v1334
    %v1336 = vrot.slane %v1335, 2
    %v1337 = vmax.f32 %v1335, %v1336
    %v1338 = vrot.slane %v1337, 1
    %v1339 = vmax.f32 %v1337, %v1338
    %v1340 = vsel %vm554, %v1281, -inf
    %v1341 = vsel %vm1286, %v1282, -inf
    %v1342 = vmax.f32 %v1340, %v1341
    %v1343 = vrot.slane %v1342, 4
    %v1344 = vmax.f32 %v1342, %v1343
    %v1345 = vrot.slane %v1344, 2
    %v1346 = vmax.f32 %v1344, %v1345
    %v1347 = vrot.slane %v1346, 1
    %v1348 = vmax.f32 %v1346, %v1347
    %v1349 = vsel %vm554, %v1283, -inf
    %v1350 = vsel %vm1286, %v1284, -inf
    %v1351 = vmax.f32 %v1349, %v1350
    %v1352 = vrot.slane %v1351, 4
    %v1353 = vmax.f32 %v1351, %v1352
    %v1354 = vrot.slane %v1353, 2
    %v1355 = vmax.f32 %v1353, %v1354
    %v1356 = vrot.slane %v1355, 1
    %v1357 = vmax.f32 %v1355, %v1356
    %v1359 = vperm.slane %v659, 0
    %v1361 = vadd.f32 %v1294, %v1359
    %v1362 = vadd.f32 %v1303, %v1359
    %v1363 = vadd.f32 %v1312, %v1359
    %v1364 = vadd.f32 %v1321, %v1359
    %v1365 = vadd.f32 %v1330, %v1359
    %v1366 = vadd.f32 %v1339, %v1359
    %v1367 = vadd.f32 %v1348, %v1359
    %v1368 = vadd.f32 %v1357, %v1359
    %v1369 = vmax.f32 %v1361, 0.0
    %v1370 = vmax.f32 %v1362, 0.0
    %v1371 = vmax.f32 %v1363, 0.0
    %v1372 = vmax.f32 %v1364, 0.0
    %v1373 = vmax.f32 %v1365, 0.0
    %v1374 = vmax.f32 %v1366, 0.0
    %v1375 = vmax.f32 %v1367, 0.0
    %v1376 = vmax.f32 %v1368, 0.0
    %v1385 = vrot.slane %v640, 7
    %vm1386 = vcmask 1041409
    %v1387 = vsel %vm1386, %v1385, %v639
    %v1388 = vrot.slane %v641, 6
    %vm1389 = vcmask 1042434
    %v1390 = vsel %vm1389, %v1388, %v1387
    %v1391 = vrot.slane %v642, 5
    %vm1392 = vcmask 1043459
    %v1393 = vsel %vm1392, %v1391, %v1390
    %v1394 = vrot.slane %v643, 4
    %vm1395 = vcmask 1044484
    %v1396 = vsel %vm1395, %v1394, %v1393
    %v1397 = vrot.slane %v644, 3
    %vm1398 = vcmask 1045509
    %v1399 = vsel %vm1398, %v1397, %v1396
    %v1400 = vrot.slane %v645, 2
    %vm1401 = vcmask 1046534
    %v1402 = vsel %vm1401, %v1400, %v1399
    %v1403 = vrot.slane %v646, 1
    %vm1404 = vcmask 1047559
    %v1405 = vsel %vm1404, %v1403, %v1402
    %v1415 = vrot.slane %v1370, 7
    %v1416 = vsel %vm1386, %v1415, %v1369
    %v1417 = vrot.slane %v1371, 6
    %v1418 = vsel %vm1389, %v1417, %v1416
    %v1419 = vrot.slane %v1372, 5
    %v1420 = vsel %vm1392, %v1419, %v1418
    %v1421 = vrot.slane %v1373, 4
    %v1422 = vsel %vm1395, %v1421, %v1420
    %v1423 = vrot.slane %v1374, 3
    %v1424 = vsel %vm1398, %v1423, %v1422
    %v1425 = vrot.slane %v1375, 2
    %v1426 = vsel %vm1401, %v1425, %v1424
    %v1427 = vrot.slane %v1376, 1
    %v1428 = vsel %vm1404, %v1427, %v1426
    %1429 = vrot.lane.b32.xlu0 %v1428, 16
    %v1430 = vpop.permute.xlu0 %1429
    %v1432 = vsel %vm554, %v1405, %v1430
    %v1433 = vld [vmem:[%s5] sm:$0xff]
    %v1434 = vld [vmem:[%s5 + $0x8] sm:$0xff]
    %v1435 = vld [vmem:[%s5 + $0x10] sm:$0xff]
    %v1436 = vld [vmem:[%s5 + $0x18] sm:$0xff]
    %v1437 = vld [vmem:[%s6] sm:$0xff]
    %v1438 = vld [vmem:[%s6 + $0x8] sm:$0xff]
    %v1439 = vld [vmem:[%s6 + $0x10] sm:$0xff]
    %v1440 = vld [vmem:[%s6 + $0x18] sm:$0xff]
    %v1441 = vld [vmem:[%s7] sm:$0x1]
    %v1442 = vld [vmem:[%s8] sm:$0x1]
    %v1444 = vperm.slane %v1441, 0
    %v1447 = vsel %vm86, %v1432, 0
    %1449 = vmatpush.msra.mxu0 0.0
    %1450 = vmatpush.msra.mxu0 0.0
    %1451 = vmatpush.msra.mxu0 0.0
    %1452 = vmatpush.msra.mxu0 0.0
    %1453 = vmatpush.msra.mxu0 0.0
    %1454 = vmatpush.msra.mxu0 0.0
    %1455 = vmatpush.msra.mxu0 0.0
    %1456 = vmatpush.msra.mxu0 0.0
    %1457 = vmatpush.msra.mxu0 0.0
    %1458 = vmatpush.msra.mxu0 0.0
    %1459 = vmatpush.msra.mxu0 0.0
    %1460 = vmatpush.msra.mxu0 0.0
    %1461 = vmatpush.msra.mxu0 %v1436
    %1462 = vmatpush.msra.mxu0 %v1435
    %1463 = vmatpush.msra.mxu0 %v1434
    %1464 = vmatpush.msra.mxu0 %v1433
    %1465 = vmatmul.f32.gmra.mxu0 %v1447
    %v1466 = vpop.f32.mrf.mxu0
    %v1467 = vadd.f32 %v1444, %v1466
    %1468 = vdwg.mxu0
    %v1470 = vperm.slane %v1442, 0
    %1472 = vmatpush.msra.mxu0 0.0
    %1473 = vmatpush.msra.mxu0 0.0
    %1474 = vmatpush.msra.mxu0 0.0
    %1475 = vmatpush.msra.mxu0 0.0
    %1476 = vmatpush.msra.mxu0 0.0
    %1477 = vmatpush.msra.mxu0 0.0
    %1478 = vmatpush.msra.mxu0 0.0
    %1479 = vmatpush.msra.mxu0 0.0
    %1480 = vmatpush.msra.mxu0 0.0
    %1481 = vmatpush.msra.mxu0 0.0
    %1482 = vmatpush.msra.mxu0 0.0
    %1483 = vmatpush.msra.mxu0 0.0
    %1484 = vmatpush.msra.mxu0 %v1440
    %1485 = vmatpush.msra.mxu0 %v1439
    %1486 = vmatpush.msra.mxu0 %v1438
    %1487 = vmatpush.msra.mxu0 %v1437
    %1488 = vmatmul.f32.gmra.mxu0 %v1447
    %v1489 = vpop.f32.mrf.mxu0
    %v1490 = vadd.f32 %v1470, %v1489
    %1491 = vdwg.mxu0
    %v1492 = vmax.f32 %v1467, 0.0
    %v1493 = vsub.f32 0.0, %v1490
    %v1494 = vmul.f32 %v1493, 1.442695
    %v1495 = vpow.pop %v1494
    %v1496 = vadd.f32 %v1495, 1.0
    %v1497 = vrcp.pop %v1496
    %v1498 = vmul.f32 %v1496, %v1497
    %v1499 = vsub.f32 1.0, %v1498
    %v1500 = vmul.f32 %v1497, %v1499
    %v1501 = vadd.f32 %v1497, %v1500
    %vm1502 = vweird.f32 %v1496
    %vm1503 = vweird.f32 %v1497
    %vm1504 = vmor %vm1502, %vm1503
    %v1505 = vsel %vm1504, %v1497, %v1501
    %v1506 = vand.u32 2147483647, %v1496
    %vm1507 = vcmp.eq.f32.partialorder %v1506, 8.507059e+37
    %v1508 = vand.u32 %v1496, 2147483648
    %v1509 = vor.u32 1.1754944e-38, %v1508
    %v1510 = vsel %vm1507, %v1509, %v1505
    %v1511 = vmul.f32 1.0, %v1510
    %v1512 = vmul.f32 %v1511, %v1432
    %v1513 = vsub.f32 1.0, %v1511
    %v1514 = vmul.f32 %v1513, %v1492
    %v1515 = vadd.f32 %v1512, %v1514
    %v1516 = vld [vmem:[#allocation2] sm:$0xff]
    %v1517 = vld [vmem:[#allocation2 + $0x8] sm:$0xff]
    %v1518 = vld [vmem:[#allocation2 + $0x10] sm:$0xff]
    %v1519 = vld [vmem:[#allocation2 + $0x18] sm:$0xff]
    %v1520 = vld [vmem:[%s10] sm:$0x1]
    %v1522 = vperm.slane %v1520, 0
    %v1525 = vsel %vm86, %v1515, 0
    %1527 = vmatpush.msra.mxu0 0.0
    %1528 = vmatpush.msra.mxu0 0.0
    %1529 = vmatpush.msra.mxu0 0.0
    %1530 = vmatpush.msra.mxu0 0.0
    %1531 = vmatpush.msra.mxu0 0.0
    %1532 = vmatpush.msra.mxu0 0.0
    %1533 = vmatpush.msra.mxu0 0.0
    %1534 = vmatpush.msra.mxu0 0.0
    %1535 = vmatpush.msra.mxu0 0.0
    %1536 = vmatpush.msra.mxu0 0.0
    %1537 = vmatpush.msra.mxu0 0.0
    %1538 = vmatpush.msra.mxu0 0.0
    %1539 = vmatpush.msra.mxu0 %v1519
    %1540 = vmatpush.msra.mxu0 %v1518
    %1541 = vmatpush.msra.mxu0 %v1517
    %1542 = vmatpush.msra.mxu0 %v1516
    %1543 = vmatmul.f32.gmra.mxu0 %v1525
    %v1544 = vpop.f32.mrf.mxu0
    %v1545 = vadd.f32 %v1522, %v1544
    %1546 = vdwg.mxu0
    %1547 = vst.msk [vmem:[#allocation5] sm:$0xff] %vm86, %v1545
    // Predicated region
    $region50: #{tpu_custom_call.1} parent=1 // pred_check
      _
    $region51: #{tpu_custom_call.1} parent=1 // pred_check_branch
      %1549 = sbr.rel (0) target = $region53
    $region52: #{tpu_custom_call.1} parent=1 // pred_region
      %1551 = vsyncadd [#allocation4], 0
      %s1553 = sshll.u32 [#allocation5], 4
      %s1554 = int_to_ptr.vmem [resolvable:$true] %s1553
      %s1555 = sshll.u32 %s11, 4
      %s1556 = int_to_ptr.hbm [resolvable:$true] %s1555
      %1558 = dma.vmem_to_hbm [thread:$0]  %s1554, 128, %s1556, [#allocation4]
    $region53: #{tpu_custom_call.1} parent=1 // pred_fallthru
      _
    // Predicated region
    $region54: #{tpu_custom_call.1} parent=1 // pred_check
      _
    $region55: #{tpu_custom_call.1} parent=1 // pred_check_branch
      %1560 = sbr.rel (0) target = $region57
    $region56: #{tpu_custom_call.1} parent=1 // pred_region
      %1562 = dma.done [#allocation4], 128
    $region57: #{tpu_custom_call.1} parent=1 // pred_fallthru
      _
    %1563 = vsyncpa [#allocation3], 1
    %1564 = vsyncpa [#allocation4], 1

</llo_original>
